<compile_context>
chip_gen: v6e
topology: v6e:2x2x1
jax: 0.10.0
libtpu: 0.0.40
codegen_flags: <defaults>
</compile_context>

<pallas_src>
import functools

import jax
import jax.numpy as jnp
from jax import lax
from jax.experimental import pallas as pl
from jax.experimental.pallas import tpu as pltpu


# ----------------------------------------------------------------------------
# Fused kernel: QKV projections + causal attention (heads batched) + out proj.
# One grid step per batch block.
# ----------------------------------------------------------------------------
def _fused_mha_kernel(x_ref, wqkv_ref, wproj_ref, bproj_ref, o_ref, cat_ref, *,
                      num_heads, head_size, compute_dtype, scale, approx_recip):
    # x_ref     : (Bt, T, C)   activations for this batch block
    # wqkv_ref  : (3H, C, hs)  head-major, input-major  [q_0..q_{H-1} | k_* | v_*]
    # wproj_ref : (C, C)       W_proj^T (input-major), compute dtype
    # bproj_ref : (1, C)       projection bias, f32
    # o_ref     : (Bt, T, C)   output
    # cat_ref   : (T, C)       VMEM scratch holding the concatenated heads
    H, hs = num_heads, head_size
    Bt, T, C = x_ref.shape

    # Causal mask, shared across heads and batch rows in this block.
    row = lax.broadcasted_iota(jnp.int32, (T, T), 0)
    col = lax.broadcasted_iota(jnp.int32, (T, T), 1)
    causal = (row >= col)[None, :, :]            # (1, T, T) -> broadcasts over heads
    # Large finite negative: the causal diagonal is never masked, so no row is
    # fully masked and exp() underflows to exactly 0 for masked entries.
    neg_big = jnp.float32(-1e30)

    wproj = wproj_ref[...]                        # (C, C)  VMEM-resident
    bias = bproj_ref[...].astype(jnp.float32)     # (1, C)

    for b in range(Bt):                           # Bt is kept small by the wrapper
        x = x_ref[b].astype(compute_dtype)        # (T, C)

        # Q/K/V projections: full-depth (C) contraction per head; heads land on a
        # leading (major) axis, so per-head extraction is a free view (no
        # sub-128-lane slicing). NOTE: real configs want hs >= 128 to also fill
        # the MXU output lanes (model choice).
        def proj(base):
            return jnp.stack(
                [jnp.dot(x, wqkv_ref[base + h], preferred_element_type=jnp.float32)
                 for h in range(H)], axis=0)      # (H, T, hs) f32

        q = (proj(0) * scale).astype(compute_dtype)   # scale applied in f32
        k = proj(H).astype(compute_dtype)
        v = proj(2 * H).astype(compute_dtype)

        # Batched-over-heads QK^T -> (H, T, T).
        s = lax.dot_general(q, k, (((2,), (2,)), ((0,), (0,))),
                            preferred_element_type=jnp.float32)
        s = jnp.where(causal, s, neg_big)

        # Softmax (f32 elementwise math; divide on EUP via approx reciprocal on
        # the fast path, exact division on the f32 path).
        s = s - jnp.max(s, axis=-1, keepdims=True)
        e = jnp.exp(s)
        denom = jnp.sum(e, axis=-1, keepdims=True)
        if approx_recip:
            p = e * pl.reciprocal(denom, approx=True)
        else:
            p = e / denom

        # Batched-over-heads PV -> (H, T, hs).
        o = lax.dot_general(p.astype(compute_dtype), v, (((2,), (1,)), ((0,), (0,))),
                            preferred_element_type=jnp.float32)

        # Concatenate heads into the (T, C) VMEM scratch, then ONE deep
        # (T,C)@(C,C) output-projection GEMM (contraction dim C, not hs).
        for h in range(H):
            cat_ref[:, h * hs:(h + 1) * hs] = o[h].astype(compute_dtype)
        y = jnp.dot(cat_ref[...], wproj, preferred_element_type=jnp.float32) + bias

        # TODO(synk): for C < 128 (like this toy config) a lane-dense output
        # (wrapper-side reshape to a (..., 128) slab) avoids masked vst.msk
        # partial stores; irrelevant once C is a multiple of 128.
        o_ref[b] = y.astype(o_ref.dtype)


# ----------------------------------------------------------------------------
# Wrapper
# ----------------------------------------------------------------------------
def _pick_batch_block(batch, per_batch_bytes, target_bytes=512 * 1024):
    """Amortize the ~0.35us/step grid overhead (>= target bytes per step) while
    keeping >= 2 parallel grid steps when batch >= 2 (v7x has 2 TensorCores)."""
    want = max(1, target_bytes // max(per_batch_bytes, 1))
    cap = batch if batch < 2 else batch // 2
    bt = max(1, min(want, cap))
    while batch % bt:
        bt -= 1
    return bt


def _vmem_limit_bytes(working_set_bytes):
    """Per-generation scoped-VMEM limit: at least 32 MiB (>= every default
    scoped limit), at most ~75% of physical VMEM (64 MiB/TC on v7x)."""
    try:
        cap = pltpu.get_tpu_info().vmem_capacity_bytes
    except Exception:
        cap = 64 << 20                       # conservative (v7x per-TC physical)
    want = int(working_set_bytes * 1.5) + (4 << 20)
    return int(min(max(32 << 20, want), (cap * 3) // 4))


def multi_head_attention_with_residual_connection(x, params, *,
                                                  compute_dtype=jnp.bfloat16,
                                                  batch_block=None):
    """Forward pass matching the PyTorch module (which, despite its name,
    returns proj(concat(heads)) with no residual add in forward).

    x: (B, T, C); params: wq/wk/wv (H, hs, C) PyTorch (out,in) layout,
    w_proj (C, C), b_proj (C,).
    """
    B, T, C = x.shape
    wq, wk, wv = params["wq"], params["wk"], params["wv"]
    H, hs, _ = wq.shape
    assert H * hs == C, "num_heads * head_size must equal n_embed"

    def in_major(w):          # (H, hs, C) PyTorch (out, in) -> (H, C, hs) input-major
        return jnp.transpose(w, (0, 2, 1))

    # Head-major, input-major stacked QKV weights: (3H, C, hs), cast once.
    wqkv = jnp.concatenate([in_major(wq), in_major(wk), in_major(wv)],
                           axis=0).astype(compute_dtype)
    wproj_t = params["w_proj"].T.astype(compute_dtype)        # (C, C) input-major
    bproj = params["b_proj"].reshape(1, C).astype(jnp.float32)

    if batch_block is None:
        batch_block = _pick_batch_block(B, T * C * x.dtype.itemsize)
    assert B % batch_block == 0
    grid_b = B // batch_block

    # Rough per-step working set -> scoped-VMEM limit.
    cbytes = jnp.dtype(compute_dtype).itemsize
    io_block = batch_block * T * C * x.dtype.itemsize
    weights = (3 * H * C * hs + C * C) * cbytes + 4 * C
    temps = (3 * H * T * hs + 2 * H * T * T + 2 * T * C) * 4 + T * C * cbytes
    working = 2 * 2 * io_block + weights + temps      # in+out, double buffered

    kernel = functools.partial(
        _fused_mha_kernel, num_heads=H, head_size=hs, compute_dtype=compute_dtype,
        scale=float(C) ** -0.5,                       # matches PyTorch: n_embed**-0.5
        approx_recip=(jnp.dtype(compute_dtype) != jnp.dtype(jnp.float32)))

    # TODO(synk): before scaling T (>~1024), switch to a flash-style (q-tile,
    # kv-tile) grid with online-softmax scratch and causal kv-tile skipping;
    # halve the tile budget on v7x (64 MiB VMEM/TC) vs v5e/v6e.
    # TODO(synk): on v7x, mark the constant-index weight BlockSpecs below with
    # pipeline_mode=pl.Buffered(1) to drop their unused second pipeline buffer.
    return pl.pallas_call(
        kernel,
        out_shape=jax.ShapeDtypeStruct((B, T, C), x.dtype),
        grid_spec=pltpu.PrefetchScalarGridSpec(
            num_scalar_prefetch=0,
            grid=(grid_b,),
            in_specs=[
                pl.BlockSpec((batch_block, T, C), lambda i: (i, 0, 0)),
                pl.BlockSpec((3 * H, C, hs), lambda i: (0, 0, 0)),   # VMEM-resident
                pl.BlockSpec((C, C), lambda i: (0, 0)),              # VMEM-resident
                pl.BlockSpec((1, C), lambda i: (0, 0)),
            ],
            out_specs=pl.BlockSpec((batch_block, T, C), lambda i: (i, 0, 0)),
            scratch_shapes=[pltpu.VMEM((T, C), compute_dtype)],
        ),
        compiler_params=pltpu.CompilerParams(
            dimension_semantics=("parallel",),
            vmem_limit_bytes=_vmem_limit_bytes(working)),
    )(x, wqkv, wproj_t, bproj)


# ----------------------------------------------------------------------------
# Params + pure-JAX reference
# ----------------------------------------------------------------------------
def init_params(key, num_heads, head_size, n_embed):
    kq, kk, kv, kp, kb = jax.random.split(key, 5)
    lim = 1.0 / jnp.sqrt(n_embed)
    return {
        "wq": jax.random.uniform(kq, (num_heads, head_size, n_embed),
                                 jnp.float32, -lim, lim),
        "wk": jax.random.uniform(kk, (num_heads, head_size, n_embed),
                                 jnp.float32, -lim, lim),
        "wv": jax.random.uniform(kv, (num_heads, head_size, n_embed),
                                 jnp.float32, -lim, lim),
        "w_proj": jax.random.uniform(kp, (n_embed, n_embed),
                                     jnp.float32, -lim, lim),
        "b_proj": jax.random.uniform(kb, (n_embed,),
                                     jnp.float32, -lim, lim),
    }


def _reference(x, params):
    """Pure-JAX f32 reference identical to the PyTorch forward."""
    B, T, C = x.shape
    outs = []
    for h in range(params["wq"].shape[0]):
        q = x @ params["wq"][h].T
        k = x @ params["wk"][h].T
        v = x @ params["wv"][h].T
        wei = (q @ jnp.swapaxes(k, -2, -1)) * (C ** -0.5)
        tril = jnp.tril(jnp.ones((T, T)))
        wei = jnp.where(tril == 0, -jnp.inf, wei)
        wei = jax.nn.softmax(wei, axis=-1)
        outs.append(wei @ v)
    cat = jnp.concatenate(outs, axis=-1)
    return cat @ params["w_proj"].T + params["b_proj"]


if __name__ == "__main__":
    # Small shapes: batch=2, seq(block_size)=8, n_embed=32, 4 heads of size 8.
    B, T, C = 2, 8, 32
    num_heads, head_size = 4, 8

    key = jax.random.PRNGKey(0)
    kx, kp = jax.random.split(key)
    x = jax.random.normal(kx, (B, T, C), jnp.float32)
    params = init_params(kp, num_heads, head_size, C)

    ref = _reference(x, params)

    # f32-operand path (exact softmax division -> tight check).
    out_f32 = multi_head_attention_with_residual_connection(
        x, params, compute_dtype=jnp.float32)
    out_f32 = jax.block_until_ready(out_f32)
    assert out_f32.shape == (B, T, C)
    err32 = float(jnp.max(jnp.abs(out_f32 - ref)))
    assert jnp.allclose(out_f32, ref, atol=1e-2, rtol=1e-2), \
        f"f32 path max abs err {err32}"

    # bf16 MXU operands with f32 accumulation (fast path; looser tolerance).
    out_bf16 = multi_head_attention_with_residual_connection(
        x, params, compute_dtype=jnp.bfloat16)
    out_bf16 = jax.block_until_ready(out_bf16)
    errbf = float(jnp.max(jnp.abs(out_bf16 - ref)))
    assert jnp.allclose(out_bf16, ref, atol=5e-2, rtol=5e-2), \
        f"bf16 path max abs err {errbf}"

    print("KERNEL_OK")
</pallas_src>

<mosaic_0001>
module attributes {stable_mosaic.version = 11 : i64} {
  func.func @_fused_mha_kernel(%arg0: i32, %arg1: memref<1x8x32xf32, #tpu.memory_space<vmem>>, %arg2: memref<12x32x8xf32, #tpu.memory_space<vmem>>, %arg3: memref<32x32xf32, #tpu.memory_space<vmem>>, %arg4: memref<1x32xf32, #tpu.memory_space<vmem>>, %arg5: memref<1x8x32xf32, #tpu.memory_space<vmem>>, %arg6: memref<8x32xf32, #tpu.memory_space<vmem>>) attributes {dimension_semantics = [#tpu.dimension_semantics<parallel>], iteration_bounds = array<i64: 2>, scalar_prefetch = 0 : i64, scratch_operands = 1 : i64, tpu.core_type = #tpu.core_type<tc>, window_params = [{transform_indices = @transform_0, window_bounds = array<i64: 1, 8, 32>}, {pipeline_mode = #tpu.pipeline_mode<synchronous>, transform_indices = @transform_1, window_bounds = array<i64: 12, 32, 8>}, {pipeline_mode = #tpu.pipeline_mode<synchronous>, transform_indices = @transform_2, window_bounds = array<i64: 32, 32>}, {pipeline_mode = #tpu.pipeline_mode<synchronous>, transform_indices = @transform_3, window_bounds = array<i64: 1, 32>}, {transform_indices = @transform_4, window_bounds = array<i64: 1, 8, 32>}]} {
    %0 = tpu.iota {dimensions = array<i32: 0>} : vector<8x8xi32>
    %1 = tpu.iota {dimensions = array<i32: 1>} : vector<8x8xi32>
    %2 = arith.cmpi sge, %0, %1 : vector<8x8xi32>
    %3 = vector.shape_cast %2 : vector<8x8xi1> to vector<1x8x8xi1>
    %c0 = arith.constant 0 : index
    %c0_0 = arith.constant 0 : index
    %4 = vector.load %arg3[%c0, %c0_0] : memref<32x32xf32, #tpu.memory_space<vmem>>, vector<32x32xf32>
    %c0_1 = arith.constant 0 : index
    %c0_2 = arith.constant 0 : index
    %5 = vector.load %arg4[%c0_1, %c0_2] : memref<1x32xf32, #tpu.memory_space<vmem>>, vector<1x32xf32>
    %c0_3 = arith.constant 0 : index
    %c0_4 = arith.constant 0 : index
    %c0_5 = arith.constant 0 : index
    %6 = vector.load %arg1[%c0_3, %c0_4, %c0_5] : memref<1x8x32xf32, #tpu.memory_space<vmem>>, vector<1x8x32xf32>
    %7 = vector.shape_cast %6 : vector<1x8x32xf32> to vector<8x32xf32>
    %c0_6 = arith.constant 0 : index
    %c0_7 = arith.constant 0 : index
    %c0_8 = arith.constant 0 : index
    %8 = vector.load %arg2[%c0_6, %c0_7, %c0_8] : memref<12x32x8xf32, #tpu.memory_space<vmem>>, vector<1x32x8xf32>
    %9 = vector.shape_cast %8 : vector<1x32x8xf32> to vector<32x8xf32>
    %cst = arith.constant dense<0.000000e+00> : vector<8x8xf32>
    %10 = tpu.matmul %7, %9, %cst {dimension_numbers = #tpu.dot_dimension_numbers<[1], [0], [0], [1], [0, 0, 1, 1], [], []>} : vector<8x32xf32>, vector<32x8xf32>, vector<8x8xf32> -> vector<8x8xf32>
    %c1 = arith.constant 1 : index
    %c0_9 = arith.constant 0 : index
    %c0_10 = arith.constant 0 : index
    %11 = vector.load %arg2[%c1, %c0_9, %c0_10] : memref<12x32x8xf32, #tpu.memory_space<vmem>>, vector<1x32x8xf32>
    %12 = vector.shape_cast %11 : vector<1x32x8xf32> to vector<32x8xf32>
    %cst_11 = arith.constant dense<0.000000e+00> : vector<8x8xf32>
    %13 = tpu.matmul %7, %12, %cst_11 {dimension_numbers = #tpu.dot_dimension_numbers<[1], [0], [0], [1], [0, 0, 1, 1], [], []>} : vector<8x32xf32>, vector<32x8xf32>, vector<8x8xf32> -> vector<8x8xf32>
    %c2 = arith.constant 2 : index
    %c0_12 = arith.constant 0 : index
    %c0_13 = arith.constant 0 : index
    %14 = vector.load %arg2[%c2, %c0_12, %c0_13] : memref<12x32x8xf32, #tpu.memory_space<vmem>>, vector<1x32x8xf32>
    %15 = vector.shape_cast %14 : vector<1x32x8xf32> to vector<32x8xf32>
    %cst_14 = arith.constant dense<0.000000e+00> : vector<8x8xf32>
    %16 = tpu.matmul %7, %15, %cst_14 {dimension_numbers = #tpu.dot_dimension_numbers<[1], [0], [0], [1], [0, 0, 1, 1], [], []>} : vector<8x32xf32>, vector<32x8xf32>, vector<8x8xf32> -> vector<8x8xf32>
    %c3 = arith.constant 3 : index
    %c0_15 = arith.constant 0 : index
    %c0_16 = arith.constant 0 : index
    %17 = vector.load %arg2[%c3, %c0_15, %c0_16] : memref<12x32x8xf32, #tpu.memory_space<vmem>>, vector<1x32x8xf32>
    %18 = vector.shape_cast %17 : vector<1x32x8xf32> to vector<32x8xf32>
    %cst_17 = arith.constant dense<0.000000e+00> : vector<8x8xf32>
    %19 = tpu.matmul %7, %18, %cst_17 {dimension_numbers = #tpu.dot_dimension_numbers<[1], [0], [0], [1], [0, 0, 1, 1], [], []>} : vector<8x32xf32>, vector<32x8xf32>, vector<8x8xf32> -> vector<8x8xf32>
    %20 = vector.shape_cast %10 : vector<8x8xf32> to vector<1x8x8xf32>
    %21 = vector.shape_cast %13 : vector<8x8xf32> to vector<1x8x8xf32>
    %22 = vector.shape_cast %16 : vector<8x8xf32> to vector<1x8x8xf32>
    %23 = vector.shape_cast %19 : vector<8x8xf32> to vector<1x8x8xf32>
    %24 = tpu.concatenate %20, %21, %22, %23 in 0 : vector<1x8x8xf32>, vector<1x8x8xf32>, vector<1x8x8xf32>, vector<1x8x8xf32> -> vector<4x8x8xf32>
    %cst_18 = arith.constant 0.176776692 : f32
    %25 = vector.broadcast %cst_18 : f32 to vector<4x8x8xf32>
    %26 = arith.mulf %24, %25 : vector<4x8x8xf32>
    %c4 = arith.constant 4 : index
    %c0_19 = arith.constant 0 : index
    %c0_20 = arith.constant 0 : index
    %27 = vector.load %arg2[%c4, %c0_19, %c0_20] : memref<12x32x8xf32, #tpu.memory_space<vmem>>, vector<1x32x8xf32>
    %28 = vector.shape_cast %27 : vector<1x32x8xf32> to vector<32x8xf32>
    %cst_21 = arith.constant dense<0.000000e+00> : vector<8x8xf32>
    %29 = tpu.matmul %7, %28, %cst_21 {dimension_numbers = #tpu.dot_dimension_numbers<[1], [0], [0], [1], [0, 0, 1, 1], [], []>} : vector<8x32xf32>, vector<32x8xf32>, vector<8x8xf32> -> vector<8x8xf32>
    %c5 = arith.constant 5 : index
    %c0_22 = arith.constant 0 : index
    %c0_23 = arith.constant 0 : index
    %30 = vector.load %arg2[%c5, %c0_22, %c0_23] : memref<12x32x8xf32, #tpu.memory_space<vmem>>, vector<1x32x8xf32>
    %31 = vector.shape_cast %30 : vector<1x32x8xf32> to vector<32x8xf32>
    %cst_24 = arith.constant dense<0.000000e+00> : vector<8x8xf32>
    %32 = tpu.matmul %7, %31, %cst_24 {dimension_numbers = #tpu.dot_dimension_numbers<[1], [0], [0], [1], [0, 0, 1, 1], [], []>} : vector<8x32xf32>, vector<32x8xf32>, vector<8x8xf32> -> vector<8x8xf32>
    %c6 = arith.constant 6 : index
    %c0_25 = arith.constant 0 : index
    %c0_26 = arith.constant 0 : index
    %33 = vector.load %arg2[%c6, %c0_25, %c0_26] : memref<12x32x8xf32, #tpu.memory_space<vmem>>, vector<1x32x8xf32>
    %34 = vector.shape_cast %33 : vector<1x32x8xf32> to vector<32x8xf32>
    %cst_27 = arith.constant dense<0.000000e+00> : vector<8x8xf32>
    %35 = tpu.matmul %7, %34, %cst_27 {dimension_numbers = #tpu.dot_dimension_numbers<[1], [0], [0], [1], [0, 0, 1, 1], [], []>} : vector<8x32xf32>, vector<32x8xf32>, vector<8x8xf32> -> vector<8x8xf32>
    %c7 = arith.constant 7 : index
    %c0_28 = arith.constant 0 : index
    %c0_29 = arith.constant 0 : index
    %36 = vector.load %arg2[%c7, %c0_28, %c0_29] : memref<12x32x8xf32, #tpu.memory_space<vmem>>, vector<1x32x8xf32>
    %37 = vector.shape_cast %36 : vector<1x32x8xf32> to vector<32x8xf32>
    %cst_30 = arith.constant dense<0.000000e+00> : vector<8x8xf32>
    %38 = tpu.matmul %7, %37, %cst_30 {dimension_numbers = #tpu.dot_dimension_numbers<[1], [0], [0], [1], [0, 0, 1, 1], [], []>} : vector<8x32xf32>, vector<32x8xf32>, vector<8x8xf32> -> vector<8x8xf32>
    %39 = vector.shape_cast %29 : vector<8x8xf32> to vector<1x8x8xf32>
    %40 = vector.shape_cast %32 : vector<8x8xf32> to vector<1x8x8xf32>
    %41 = vector.shape_cast %35 : vector<8x8xf32> to vector<1x8x8xf32>
    %42 = vector.shape_cast %38 : vector<8x8xf32> to vector<1x8x8xf32>
    %43 = tpu.concatenate %39, %40, %41, %42 in 0 : vector<1x8x8xf32>, vector<1x8x8xf32>, vector<1x8x8xf32>, vector<1x8x8xf32> -> vector<4x8x8xf32>
    %c8 = arith.constant 8 : index
    %c0_31 = arith.constant 0 : index
    %c0_32 = arith.constant 0 : index
    %44 = vector.load %arg2[%c8, %c0_31, %c0_32] : memref<12x32x8xf32, #tpu.memory_space<vmem>>, vector<1x32x8xf32>
    %45 = vector.shape_cast %44 : vector<1x32x8xf32> to vector<32x8xf32>
    %cst_33 = arith.constant dense<0.000000e+00> : vector<8x8xf32>
    %46 = tpu.matmul %7, %45, %cst_33 {dimension_numbers = #tpu.dot_dimension_numbers<[1], [0], [0], [1], [0, 0, 1, 1], [], []>} : vector<8x32xf32>, vector<32x8xf32>, vector<8x8xf32> -> vector<8x8xf32>
    %c9 = arith.constant 9 : index
    %c0_34 = arith.constant 0 : index
    %c0_35 = arith.constant 0 : index
    %47 = vector.load %arg2[%c9, %c0_34, %c0_35] : memref<12x32x8xf32, #tpu.memory_space<vmem>>, vector<1x32x8xf32>
    %48 = vector.shape_cast %47 : vector<1x32x8xf32> to vector<32x8xf32>
    %cst_36 = arith.constant dense<0.000000e+00> : vector<8x8xf32>
    %49 = tpu.matmul %7, %48, %cst_36 {dimension_numbers = #tpu.dot_dimension_numbers<[1], [0], [0], [1], [0, 0, 1, 1], [], []>} : vector<8x32xf32>, vector<32x8xf32>, vector<8x8xf32> -> vector<8x8xf32>
    %c10 = arith.constant 10 : index
    %c0_37 = arith.constant 0 : index
    %c0_38 = arith.constant 0 : index
    %50 = vector.load %arg2[%c10, %c0_37, %c0_38] : memref<12x32x8xf32, #tpu.memory_space<vmem>>, vector<1x32x8xf32>
    %51 = vector.shape_cast %50 : vector<1x32x8xf32> to vector<32x8xf32>
    %cst_39 = arith.constant dense<0.000000e+00> : vector<8x8xf32>
    %52 = tpu.matmul %7, %51, %cst_39 {dimension_numbers = #tpu.dot_dimension_numbers<[1], [0], [0], [1], [0, 0, 1, 1], [], []>} : vector<8x32xf32>, vector<32x8xf32>, vector<8x8xf32> -> vector<8x8xf32>
    %c11 = arith.constant 11 : index
    %c0_40 = arith.constant 0 : index
    %c0_41 = arith.constant 0 : index
    %53 = vector.load %arg2[%c11, %c0_40, %c0_41] : memref<12x32x8xf32, #tpu.memory_space<vmem>>, vector<1x32x8xf32>
    %54 = vector.shape_cast %53 : vector<1x32x8xf32> to vector<32x8xf32>
    %cst_42 = arith.constant dense<0.000000e+00> : vector<8x8xf32>
    %55 = tpu.matmul %7, %54, %cst_42 {dimension_numbers = #tpu.dot_dimension_numbers<[1], [0], [0], [1], [0, 0, 1, 1], [], []>} : vector<8x32xf32>, vector<32x8xf32>, vector<8x8xf32> -> vector<8x8xf32>
    %56 = vector.shape_cast %46 : vector<8x8xf32> to vector<1x8x8xf32>
    %57 = vector.shape_cast %49 : vector<8x8xf32> to vector<1x8x8xf32>
    %58 = vector.shape_cast %52 : vector<8x8xf32> to vector<1x8x8xf32>
    %59 = vector.shape_cast %55 : vector<8x8xf32> to vector<1x8x8xf32>
    %60 = tpu.concatenate %56, %57, %58, %59 in 0 : vector<1x8x8xf32>, vector<1x8x8xf32>, vector<1x8x8xf32>, vector<1x8x8xf32> -> vector<4x8x8xf32>
    %cst_43 = arith.constant dense<0.000000e+00> : vector<4x8x8xf32>
    %61 = tpu.matmul %26, %43, %cst_43 {dimension_numbers = #tpu.dot_dimension_numbers<[2], [2], [1], [1], [0, 0, 0, 1, 1, 1], [0], [0]>} : vector<4x8x8xf32>, vector<4x8x8xf32>, vector<4x8x8xf32> -> vector<4x8x8xf32>
    %cst_44 = arith.constant -1.000000e+30 : f32
    %62 = vector.shape_cast %3 : vector<1x8x8xi1> to vector<1x8x8xi1>
    %63 = vector.broadcast %62 : vector<1x8x8xi1> to vector<4x8x8xi1>
    %64 = vector.broadcast %cst_44 : f32 to vector<4x8x8xf32>
    %65 = arith.select %63, %61, %64 : vector<4x8x8xi1>, vector<4x8x8xf32>
    %cst_45 = arith.constant dense<0xFF800000> : vector<4x8xf32>
    %66 = vector.multi_reduction <maximumf>, %65, %cst_45 [2] : vector<4x8x8xf32> to vector<4x8xf32>
    %67 = vector.shape_cast %66 : vector<4x8xf32> to vector<4x8x1xf32>
    %68 = vector.broadcast %67 : vector<4x8x1xf32> to vector<4x8x8xf32>
    %69 = arith.subf %65, %68 : vector<4x8x8xf32>
    %70 = math.exp %69 : vector<4x8x8xf32>
    %cst_46 = arith.constant dense<0.000000e+00> : vector<4x8xf32>
    %71 = vector.multi_reduction <add>, %70, %cst_46 [2] : vector<4x8x8xf32> to vector<4x8xf32>
    %72 = vector.shape_cast %71 : vector<4x8xf32> to vector<4x8x1xf32>
    %73 = vector.broadcast %72 : vector<4x8x1xf32> to vector<4x8x8xf32>
    %74 = arith.divf %70, %73 : vector<4x8x8xf32>
    %cst_47 = arith.constant dense<0.000000e+00> : vector<4x8x8xf32>
    %75 = tpu.matmul %74, %60, %cst_47 {dimension_numbers = #tpu.dot_dimension_numbers<[2], [1], [1], [2], [0, 0, 0, 1, 1, 2], [0], [0]>} : vector<4x8x8xf32>, vector<4x8x8xf32>, vector<4x8x8xf32> -> vector<4x8x8xf32>
    %76 = vector.extract_strided_slice %75 {offsets = [0, 0, 0], sizes = [1, 8, 8], strides = [1, 1, 1]} : vector<4x8x8xf32> to vector<1x8x8xf32>
    %77 = vector.shape_cast %76 : vector<1x8x8xf32> to vector<8x8xf32>
    %c0_48 = arith.constant 0 : index
    %c0_49 = arith.constant 0 : index
    %78 = vector.load %arg6[%c0_48, %c0_49] : memref<8x32xf32, #tpu.memory_space<vmem>>, vector<8x8xf32>
    tpu.vector_store %arg6[%c0_48, %c0_49], %77 {strides = array<i32>} : memref<8x32xf32, #tpu.memory_space<vmem>>, vector<8x8xf32>,
    %79 = vector.extract_strided_slice %75 {offsets = [1, 0, 0], sizes = [1, 8, 8], strides = [1, 1, 1]} : vector<4x8x8xf32> to vector<1x8x8xf32>
    %80 = vector.shape_cast %79 : vector<1x8x8xf32> to vector<8x8xf32>
    %c0_50 = arith.constant 0 : index
    %c8_51 = arith.constant 8 : index
    %81 = vector.load %arg6[%c0_50, %c8_51] : memref<8x32xf32, #tpu.memory_space<vmem>>, vector<8x8xf32>
    tpu.vector_store %arg6[%c0_50, %c8_51], %80 {strides = array<i32>} : memref<8x32xf32, #tpu.memory_space<vmem>>, vector<8x8xf32>,
    %82 = vector.extract_strided_slice %75 {offsets = [2, 0, 0], sizes = [1, 8, 8], strides = [1, 1, 1]} : vector<4x8x8xf32> to vector<1x8x8xf32>
    %83 = vector.shape_cast %82 : vector<1x8x8xf32> to vector<8x8xf32>
    %c0_52 = arith.constant 0 : index
    %c16 = arith.constant 16 : index
    %84 = vector.load %arg6[%c0_52, %c16] : memref<8x32xf32, #tpu.memory_space<vmem>>, vector<8x8xf32>
    tpu.vector_store %arg6[%c0_52, %c16], %83 {strides = array<i32>} : memref<8x32xf32, #tpu.memory_space<vmem>>, vector<8x8xf32>,
    %85 = vector.extract_strided_slice %75 {offsets = [3, 0, 0], sizes = [1, 8, 8], strides = [1, 1, 1]} : vector<4x8x8xf32> to vector<1x8x8xf32>
    %86 = vector.shape_cast %85 : vector<1x8x8xf32> to vector<8x8xf32>
    %c0_53 = arith.constant 0 : index
    %c24 = arith.constant 24 : index
    %87 = vector.load %arg6[%c0_53, %c24] : memref<8x32xf32, #tpu.memory_space<vmem>>, vector<8x8xf32>
    tpu.vector_store %arg6[%c0_53, %c24], %86 {strides = array<i32>} : memref<8x32xf32, #tpu.memory_space<vmem>>, vector<8x8xf32>,
    %c0_54 = arith.constant 0 : index
    %c0_55 = arith.constant 0 : index
    %88 = vector.load %arg6[%c0_54, %c0_55] : memref<8x32xf32, #tpu.memory_space<vmem>>, vector<8x32xf32>
    %cst_56 = arith.constant dense<0.000000e+00> : vector<8x32xf32>
    %89 = tpu.matmul %88, %4, %cst_56 {dimension_numbers = #tpu.dot_dimension_numbers<[1], [0], [0], [1], [0, 0, 1, 1], [], []>} : vector<8x32xf32>, vector<32x32xf32>, vector<8x32xf32> -> vector<8x32xf32>
    %90 = vector.broadcast %5 : vector<1x32xf32> to vector<8x32xf32>
    %91 = arith.addf %89, %90 : vector<8x32xf32>
    %c0_57 = arith.constant 0 : index
    %c0_58 = arith.constant 0 : index
    %c0_59 = arith.constant 0 : index
    %92 = vector.load %arg5[%c0_57, %c0_58, %c0_59] : memref<1x8x32xf32, #tpu.memory_space<vmem>>, vector<1x8x32xf32>
    %93 = vector.shape_cast %92 : vector<1x8x32xf32> to vector<8x32xf32>
    %94 = vector.shape_cast %91 : vector<8x32xf32> to vector<1x8x32xf32>
    tpu.vector_store %arg5[%c0_57, %c0_58, %c0_59], %94 {strides = array<i32>} : memref<1x8x32xf32, #tpu.memory_space<vmem>>, vector<1x8x32xf32>,
    return
  }
  func.func @transform_0(%arg0: i32) -> (i32, i32, i32) {
    %c0_i32 = arith.constant 0 : i32
    %c0_i32_0 = arith.constant 0 : i32
    %c0_i32_1 = arith.constant 0 : i32
    return %arg0, %c0_i32, %c0_i32_0 : i32, i32, i32
  }
  func.func @transform_1(%arg0: i32) -> (i32, i32, i32) {
    %c0_i32 = arith.constant 0 : i32
    %c0_i32_0 = arith.constant 0 : i32
    %c0_i32_1 = arith.constant 0 : i32
    %c0_i32_2 = arith.constant 0 : i32
    return %c0_i32, %c0_i32_0, %c0_i32_1 : i32, i32, i32
  }
  func.func @transform_2(%arg0: i32) -> (i32, i32) {
    %c0_i32 = arith.constant 0 : i32
    %c0_i32_0 = arith.constant 0 : i32
    %c0_i32_1 = arith.constant 0 : i32
    return %c0_i32, %c0_i32_0 : i32, i32
  }
  func.func @transform_3(%arg0: i32) -> (i32, i32) {
    %c0_i32 = arith.constant 0 : i32
    %c0_i32_0 = arith.constant 0 : i32
    %c0_i32_1 = arith.constant 0 : i32
    return %c0_i32, %c0_i32_0 : i32, i32
  }
  func.func @transform_4(%arg0: i32) -> (i32, i32, i32) {
    %c0_i32 = arith.constant 0 : i32
    %c0_i32_0 = arith.constant 0 : i32
    %c0_i32_1 = arith.constant 0 : i32
    return %arg0, %c0_i32, %c0_i32_0 : i32, i32, i32
  }
}

</mosaic_0001>

<llo_original>
// kernel: tpu_custom_call.1
$region0: #{tpu_custom_call.1}
  #allocation0 [shape = 'u32[]', space=smem, size = 0x4, offset = 0x4, fixed_abs, tag = 'smem constant byte address 0x4 - core index']
  #allocation1 [shape = 'u32[144,128]{1,0:T(1,128)}', space=vmem, size = 0x12000, scoped, tag = 'internal scratch']
  #allocation2 [shape = 'f32[8,32]{1,0:T(8,128)}', space=vmem, size = 0x1000, scoped, tag = 'scratch operand']
  %s0 = inlined_call_operand.vmem [shape: f32[2,8,32], index: 0, kind: input, shape index: {}]
  %s1 = inlined_call_operand.vmem [shape: f32[12,32,8], index: 1, kind: input, shape index: {}]
  %s2 = inlined_call_operand.vmem [shape: f32[32,32], index: 2, kind: input, shape index: {}]
  %s3 = inlined_call_operand.vmem [shape: f32[1,32], index: 3, kind: input, shape index: {}]
  %s4 = inlined_call_operand.hbm [shape: f32[2,8,32], index: 4, kind: output, shape index: {}]
  %s5 = sld [smem:[#allocation0]]
  $region49: #{tpu_custom_call.1} parent=0
    _
  %s7 = ssub.s32 1, %s5
  %s8 = scalar_select 0, %s7, %s5
  $region1: #{tpu_custom_call.1} parent=0
    #allocation3 [shape = 'u8[8192]{0}', space=vmem, size = 0x2000, scoped, tag = 'output window, operand 0']
    #allocation4 [shape = 's32[2]{0}', space=sflag, size = 0x8, scoped, tag = 'scoped memory for tpu_custom_call.1']
    %9 = vsyncpa [#allocation4], 0
    %s10 = scalar_lea.sflag [#allocation4], 1
    %11 = vsyncpa %s10, 0
    loop: start=0, step=1, limit=4
    $region2: #{tpu_custom_call.1} parent=1 // loop_pre_header
      _
    $region3: #{tpu_custom_call.1} parent=1 // loop_header
      %s13 = sphi 0, %s17
      %p14 = scmp.ge.s32.totalorder %s13, 4
      %s23 = sphi 0, %s25
      %s26 = sphi 0, %s23
      %s27 = sphi 0, %s26
      %s43 = sphi 0, %s27
      %s47 = sphi 0, %s47
      %s49 = sphi 0, %s47
      %s50 = sphi 0, %s49
      %s64 = sphi 0, %s50
      %s68 = sphi 0, %s68
      %s70 = sphi 0, %s68
      %s71 = sphi 0, %s70
      %s85 = sphi 0, %s71
      %s89 = sphi 0, %s89
      %s91 = sphi 0, %s89
      %s92 = sphi 0, %s91
      %s106 = sphi 0, %s92
      %s112 = sphi 0, %s114
      %s115 = sphi 0, %s112
      %s116 = sphi 0, %s115
      %s132 = sphi 0, %s116
    $region4: #{tpu_custom_call.1} parent=1 // loop_header_branch
      %16 = sbr.rel (%p14) target = $region8
    $region5: #{tpu_custom_call.1} parent=1 // loop_body
      %s18 = ssub.s32 %s13, 1
      %s19 = ssub.s32 %s13, 2
      %s20 = sadd.s32 %s13, 1
      %s21 = ssub.s32 %s13, %s20
      %p22 = scmp.eq.s32.totalorder %s21, 0
      %s24 = sadd.s32 %s23, 1
      %s25 = scalar_select %p22, %s23, %s24
      %p28 = pneg %p22
      %p29 = scmp.eq.s32.totalorder %s13, 1
      %p30 = por %p28, %p29
      %p31 = scmp.ne.s32.totalorder %s23, %s26
      %p32 = scmp.eq.s32.totalorder %s13, 0
      %p33 = por %p31, %p32
      %p34 = scmp.ne.s32.totalorder %s23, %s26
      %p35 = scmp.eq.s32.totalorder %s18, 1
      %p36 = por %p34, %p35
      %p37 = scmp.ne.s32.totalorder %s26, %s27
      %p38 = scmp.eq.s32.totalorder %s18, 0
      %p39 = por %p37, %p38
      %p40 = scmp.ne.s32.totalorder %s26, %s27
      %p41 = scmp.eq.s32.totalorder %s19, 1
      %p42 = por %p40, %p41
      %p44 = scmp.ne.s32.totalorder %s27, %s43
      %p45 = scmp.eq.s32.totalorder %s19, 0
      %p46 = por %p44, %p45
      %s48 = sadd.s32 %s47, 1
      %p51 = scmp.eq.s32.totalorder %s13, 1
      %p52 = scmp.ne.s32.totalorder %s47, %s49
      %p53 = scmp.eq.s32.totalorder %s13, 0
      %p54 = por %p52, %p53
      %p55 = scmp.ne.s32.totalorder %s47, %s49
      %p56 = scmp.eq.s32.totalorder %s18, 1
      %p57 = por %p55, %p56
      %p58 = scmp.ne.s32.totalorder %s49, %s50
      %p59 = scmp.eq.s32.totalorder %s18, 0
      %p60 = por %p58, %p59
      %p61 = scmp.ne.s32.totalorder %s49, %s50
      %p62 = scmp.eq.s32.totalorder %s19, 1
      %p63 = por %p61, %p62
      %p65 = scmp.ne.s32.totalorder %s50, %s64
      %p66 = scmp.eq.s32.totalorder %s19, 0
      %p67 = por %p65, %p66
      %s69 = sadd.s32 %s68, 1
      %p72 = scmp.eq.s32.totalorder %s13, 1
      %p73 = scmp.ne.s32.totalorder %s68, %s70
      %p74 = scmp.eq.s32.totalorder %s13, 0
      %p75 = por %p73, %p74
      %p76 = scmp.ne.s32.totalorder %s68, %s70
      %p77 = scmp.eq.s32.totalorder %s18, 1
      %p78 = por %p76, %p77
      %p79 = scmp.ne.s32.totalorder %s70, %s71
      %p80 = scmp.eq.s32.totalorder %s18, 0
      %p81 = por %p79, %p80
      %p82 = scmp.ne.s32.totalorder %s70, %s71
      %p83 = scmp.eq.s32.totalorder %s19, 1
      %p84 = por %p82, %p83
      %p86 = scmp.ne.s32.totalorder %s71, %s85
      %p87 = scmp.eq.s32.totalorder %s19, 0
      %p88 = por %p86, %p87
      %s90 = sadd.s32 %s89, 1
      %p93 = scmp.eq.s32.totalorder %s13, 1
      %p94 = scmp.ne.s32.totalorder %s89, %s91
      %p95 = scmp.eq.s32.totalorder %s13, 0
      %p96 = por %p94, %p95
      %p97 = scmp.ne.s32.totalorder %s89, %s91
      %p98 = scmp.eq.s32.totalorder %s18, 1
      %p99 = por %p97, %p98
      %p100 = scmp.ne.s32.totalorder %s91, %s92
      %p101 = scmp.eq.s32.totalorder %s18, 0
      %p102 = por %p100, %p101
      %p103 = scmp.ne.s32.totalorder %s91, %s92
      %p104 = scmp.eq.s32.totalorder %s19, 1
      %p105 = por %p103, %p104
      %p107 = scmp.ne.s32.totalorder %s92, %s106
      %p108 = scmp.eq.s32.totalorder %s19, 0
      %p109 = por %p107, %p108
      %s110 = ssub.s32 %s13, %s20
      %p111 = scmp.eq.s32.totalorder %s110, 0
      %s113 = sadd.s32 %s112, 1
      %s114 = scalar_select %p111, %s112, %s113
      %p117 = pneg %p111
      %p118 = scmp.eq.s32.totalorder %s13, 1
      %p119 = por %p117, %p118
      %p120 = scmp.ne.s32.totalorder %s112, %s115
      %p121 = scmp.eq.s32.totalorder %s13, 0
      %p122 = por %p120, %p121
      %p123 = scmp.ne.s32.totalorder %s112, %s115
      %p124 = scmp.eq.s32.totalorder %s18, 1
      %p125 = por %p123, %p124
      %p126 = scmp.ne.s32.totalorder %s115, %s116
      %p127 = scmp.eq.s32.totalorder %s18, 0
      %p128 = por %p126, %p127
      %p129 = scmp.ne.s32.totalorder %s115, %s116
      %p130 = scmp.eq.s32.totalorder %s19, 1
      %p131 = por %p129, %p130
      %p133 = scmp.ne.s32.totalorder %s116, %s132
      %p134 = scmp.eq.s32.totalorder %s19, 0
      %p135 = por %p133, %p134
      %p136 = scmp.le.s32.totalorder 1, %s13
      %p137 = scmp.lt.s32.totalorder %s13, 3
      %p138 = pnand %p136, %p137
      %p139 = pneg %p138
      // Predicated region
      $region9: #{tpu_custom_call.1} parent=5 // pred_check
        _
      $region10: #{tpu_custom_call.1} parent=5 // pred_check_branch
        %141 = sbr.rel (%p138) target = $region12
      $region11: #{tpu_custom_call.1} parent=5 // pred_region
        %s142 = ssub.s32 %s13, 1
        // Predicated region
        $region13: #{tpu_custom_call.1} parent=11 // pred_check
          %p143 = pneg %p60
        $region14: #{tpu_custom_call.1} parent=11 // pred_check_branch
          %145 = sbr.rel (%p143) target = $region16
        $region15: #{tpu_custom_call.1} parent=11 // pred_region
          _
        $region16: #{tpu_custom_call.1} parent=11 // pred_fallthru
          _
        // Predicated region
        $region17: #{tpu_custom_call.1} parent=11 // pred_check
          %p146 = pneg %p81
        $region18: #{tpu_custom_call.1} parent=11 // pred_check_branch
          %148 = sbr.rel (%p146) target = $region20
        $region19: #{tpu_custom_call.1} parent=11 // pred_region
          _
        $region20: #{tpu_custom_call.1} parent=11 // pred_fallthru
          _
        // Predicated region
        $region21: #{tpu_custom_call.1} parent=11 // pred_check
          %p149 = pneg %p102
        $region22: #{tpu_custom_call.1} parent=11 // pred_check_branch
          %151 = sbr.rel (%p149) target = $region24
        $region23: #{tpu_custom_call.1} parent=11 // pred_region
          _
        $region24: #{tpu_custom_call.1} parent=11 // pred_fallthru
          _
      $region12: #{tpu_custom_call.1} parent=5 // pred_fallthru
        _
      %p152 = scmp.lt.s32.totalorder %s13, 2
      // Predicated region
      $region25: #{tpu_custom_call.1} parent=5 // pred_check
        %p153 = pneg %p152
      $region26: #{tpu_custom_call.1} parent=5 // pred_check_branch
        %155 = sbr.rel (%p153) target = $region28
      $region27: #{tpu_custom_call.1} parent=5 // pred_region
        // Predicated region
        $region29: #{tpu_custom_call.1} parent=27 // pred_check
          %p156 = pneg %p33
        $region30: #{tpu_custom_call.1} parent=27 // pred_check_branch
          %158 = sbr.rel (%p156) target = $region32
        $region31: #{tpu_custom_call.1} parent=27 // pred_region
          %p159 = scmp.lt.s32.totalorder %s13, 1
          %s160 = scalar_select %p159, %s13, 1
          %s161 = smul.addr %s160, 8
          %s162 = scalar_lea.vmem %s0, %s161
        $region32: #{tpu_custom_call.1} parent=27 // pred_fallthru
          _
      $region28: #{tpu_custom_call.1} parent=5 // pred_fallthru
        _
      %p163 = scmp.le.s32.totalorder 1, %s13
      %p164 = scmp.lt.s32.totalorder %s13, 3
      %p165 = pnand %p163, %p164
      %p166 = pneg %p165
      // Predicated region
      $region33: #{tpu_custom_call.1} parent=5 // pred_check
        _
      $region34: #{tpu_custom_call.1} parent=5 // pred_check_branch
        %168 = sbr.rel (%p165) target = $region36
      $region35: #{tpu_custom_call.1} parent=5 // pred_region
        %s169 = ssub.s32 %s13, 1
        %p170 = scmp.lt.s32.totalorder %s18, 1
        %s171 = scalar_select %p170, %s18, 1
        %s172 = smul.addr %s171, 8
        %s173 = scalar_lea.vmem %s0, %s172
        %p174 = pneg %p39
        %p175 = pneg %p36
        %p176 = pneg %p60
        %p177 = pneg %p57
        %p178 = pneg %p81
        %p179 = pneg %p78
        %p180 = pneg %p102
        %p181 = pneg %p99
        %p182 = pneg %p128
        %p183 = pneg %p125
        %s184 = sand.u32 %s115, 1
        %s185 = scalar_lea.sflag [#allocation4], %s184
        %s186 = sand.u32 %s115, 1
        %s187 = smul.addr %s186, 8
        %s188 = scalar_lea.vmem [#allocation3], %s187
        %p189 = scmp.lt.s32.totalorder %s18, 1
        %s190 = scalar_select %p189, %s18, 1
        %s191 = smul.addr %s190, 8
        %s192 = scalar_lea.vmem %s0, %s191
        %v193 = vlaneseq
        %v194 = vshrl.u32 %v193, 7
        %v195 = vlaneseq
        %v196 = vand.u32 %v195, 127
        %vm197 = vcmp.ge.s32.totalorder %v194, %v196
        %v198 = vld [vmem:[%s2] sm:$0xff]
        %v199 = vld [vmem:[%s2 + $0x8] sm:$0xff]
        %v200 = vld [vmem:[%s2 + $0x10] sm:$0xff]
        %v201 = vld [vmem:[%s2 + $0x18] sm:$0xff]
        %v202 = vld [vmem:[%s3] sm:$0x1]
        %v203 = vld [vmem:[%s192] sm:$0xff]
        %v204 = vld [vmem:[%s1] sm:$0xff]
        %v205 = vld [vmem:[%s1 + $0x8] sm:$0xff]
        %v206 = vld [vmem:[%s1 + $0x10] sm:$0xff]
        %v207 = vld [vmem:[%s1 + $0x18] sm:$0xff]
        %vm208 = vcmask 261120
        %v210 = vsel %vm208, %v203, 0
        %212 = vmatprep.subr.mxu0 0.0
        %213 = vmatpush1.msra.mxu0 0.0
        %214 = vmatprep.subr.mxu0 0.0
        %215 = vmatpush1.msra.mxu0 0.0
        %216 = vmatprep.subr.mxu0 0.0
        %217 = vmatpush1.msra.mxu0 0.0
        %218 = vmatprep.subr.mxu0 0.0
        %219 = vmatpush1.msra.mxu0 0.0
        %220 = vmatprep.subr.mxu0 0.0
        %221 = vmatpush1.msra.mxu0 0.0
        %222 = vmatprep.subr.mxu0 0.0
        %223 = vmatpush1.msra.mxu0 0.0
        %224 = vmatprep.subr.mxu0 0.0
        %225 = vmatpush1.msra.mxu0 0.0
        %226 = vmatprep.subr.mxu0 0.0
        %227 = vmatpush1.msra.mxu0 0.0
        %228 = vmatprep.subr.mxu0 0.0
        %229 = vmatpush1.msra.mxu0 0.0
        %230 = vmatprep.subr.mxu0 0.0
        %231 = vmatpush1.msra.mxu0 0.0
        %232 = vmatprep.subr.mxu0 0.0
        %233 = vmatpush1.msra.mxu0 0.0
        %234 = vmatprep.subr.mxu0 0.0
        %235 = vmatpush1.msra.mxu0 0.0
        %236 = vmatprep.subr.mxu0 0.0
        %237 = vmatpush1.msra.mxu0 %v207
        %238 = vmatprep.subr.mxu0 0.0
        %239 = vmatpush1.msra.mxu0 %v206
        %240 = vmatprep.subr.mxu0 0.0
        %241 = vmatpush1.msra.mxu0 %v205
        %242 = vmatprep.subr.mxu0 0.0
        %243 = vmatpush1.msra.mxu0 %v204
        %244 = vmatprep.subr.mxu0 0.0
        %245 = vmatpush2.msra.mxu0 0.0
        %246 = vmatprep.subr.mxu0 0.0
        %247 = vmatpush2.msra.mxu0 0.0
        %248 = vmatprep.subr.mxu0 0.0
        %249 = vmatpush2.msra.mxu0 0.0
        %250 = vmatprep.subr.mxu0 0.0
        %251 = vmatpush2.msra.mxu0 0.0
        %252 = vmatprep.subr.mxu0 0.0
        %253 = vmatpush2.msra.mxu0 0.0
        %254 = vmatprep.subr.mxu0 0.0
        %255 = vmatpush2.msra.mxu0 0.0
        %256 = vmatprep.subr.mxu0 0.0
        %257 = vmatpush2.msra.mxu0 0.0
        %258 = vmatprep.subr.mxu0 0.0
        %259 = vmatpush2.msra.mxu0 0.0
        %260 = vmatprep.subr.mxu0 0.0
        %261 = vmatpush2.msra.mxu0 0.0
        %262 = vmatprep.subr.mxu0 0.0
        %263 = vmatpush2.msra.mxu0 0.0
        %264 = vmatprep.subr.mxu0 0.0
        %265 = vmatpush2.msra.mxu0 0.0
        %266 = vmatprep.subr.mxu0 0.0
        %267 = vmatpush2.msra.mxu0 0.0
        %268 = vmatprep.subr.mxu0 0.0
        %269 = vmatpush2.msra.mxu0 0.0
        %270 = vmatprep.subr.mxu0 0.0
        %271 = vmatpush2.msra.mxu0 0.0
        %272 = vmatprep.subr.mxu0 0.0
        %273 = vmatpush2.msra.mxu0 0.0
        %274 = vmatprep.subr.mxu0 0.0
        %275 = vmatpush2.msra.mxu0 0.0
        %276 = vmatprep.mubr.f32.mxu0 0.0
        %277 = vmatmul.mubr.f32.gmra.mxu0 %v210
        %v278 = vpop.f32.mrf.mxu0
        %v279 = vadd.f32 0.0, %v278
        %v280 = vpop.f32.mrf.mxu0
        %281 = vdwg.mxu0
        %s282 = scalar_lea.vmem %s1, 32
        %v283 = vld [vmem:[%s282] sm:$0xff]
        %v284 = vld [vmem:[%s282 + $0x8] sm:$0xff]
        %v285 = vld [vmem:[%s282 + $0x10] sm:$0xff]
        %v286 = vld [vmem:[%s282 + $0x18] sm:$0xff]
        %287 = vmatprep.subr.mxu0 0.0
        %288 = vmatpush1.msra.mxu0 0.0
        %289 = vmatprep.subr.mxu0 0.0
        %290 = vmatpush1.msra.mxu0 0.0
        %291 = vmatprep.subr.mxu0 0.0
        %292 = vmatpush1.msra.mxu0 0.0
        %293 = vmatprep.subr.mxu0 0.0
        %294 = vmatpush1.msra.mxu0 0.0
        %295 = vmatprep.subr.mxu0 0.0
        %296 = vmatpush1.msra.mxu0 0.0
        %297 = vmatprep.subr.mxu0 0.0
        %298 = vmatpush1.msra.mxu0 0.0
        %299 = vmatprep.subr.mxu0 0.0
        %300 = vmatpush1.msra.mxu0 0.0
        %301 = vmatprep.subr.mxu0 0.0
        %302 = vmatpush1.msra.mxu0 0.0
        %303 = vmatprep.subr.mxu0 0.0
        %304 = vmatpush1.msra.mxu0 0.0
        %305 = vmatprep.subr.mxu0 0.0
        %306 = vmatpush1.msra.mxu0 0.0
        %307 = vmatprep.subr.mxu0 0.0
        %308 = vmatpush1.msra.mxu0 0.0
        %309 = vmatprep.subr.mxu0 0.0
        %310 = vmatpush1.msra.mxu0 0.0
        %311 = vmatprep.subr.mxu0 0.0
        %312 = vmatpush1.msra.mxu0 %v286
        %313 = vmatprep.subr.mxu0 0.0
        %314 = vmatpush1.msra.mxu0 %v285
        %315 = vmatprep.subr.mxu0 0.0
        %316 = vmatpush1.msra.mxu0 %v284
        %317 = vmatprep.subr.mxu0 0.0
        %318 = vmatpush1.msra.mxu0 %v283
        %319 = vmatprep.subr.mxu0 0.0
        %320 = vmatpush2.msra.mxu0 0.0
        %321 = vmatprep.subr.mxu0 0.0
        %322 = vmatpush2.msra.mxu0 0.0
        %323 = vmatprep.subr.mxu0 0.0
        %324 = vmatpush2.msra.mxu0 0.0
        %325 = vmatprep.subr.mxu0 0.0
        %326 = vmatpush2.msra.mxu0 0.0
        %327 = vmatprep.subr.mxu0 0.0
        %328 = vmatpush2.msra.mxu0 0.0
        %329 = vmatprep.subr.mxu0 0.0
        %330 = vmatpush2.msra.mxu0 0.0
        %331 = vmatprep.subr.mxu0 0.0
        %332 = vmatpush2.msra.mxu0 0.0
        %333 = vmatprep.subr.mxu0 0.0
        %334 = vmatpush2.msra.mxu0 0.0
        %335 = vmatprep.subr.mxu0 0.0
        %336 = vmatpush2.msra.mxu0 0.0
        %337 = vmatprep.subr.mxu0 0.0
        %338 = vmatpush2.msra.mxu0 0.0
        %339 = vmatprep.subr.mxu0 0.0
        %340 = vmatpush2.msra.mxu0 0.0
        %341 = vmatprep.subr.mxu0 0.0
        %342 = vmatpush2.msra.mxu0 0.0
        %343 = vmatprep.subr.mxu0 0.0
        %344 = vmatpush2.msra.mxu0 0.0
        %345 = vmatprep.subr.mxu0 0.0
        %346 = vmatpush2.msra.mxu0 0.0
        %347 = vmatprep.subr.mxu0 0.0
        %348 = vmatpush2.msra.mxu0 0.0
        %349 = vmatprep.subr.mxu0 0.0
        %350 = vmatpush2.msra.mxu0 0.0
        %351 = vmatprep.mubr.f32.mxu0 0.0
        %352 = vmatmul.mubr.f32.gmra.mxu0 %v210
        %v353 = vpop.f32.mrf.mxu0
        %v354 = vadd.f32 0.0, %v353
        %v355 = vpop.f32.mrf.mxu0
        %356 = vdwg.mxu0
        %s357 = scalar_lea.vmem %s1, 64
        %v358 = vld [vmem:[%s357] sm:$0xff]
        %v359 = vld [vmem:[%s357 + $0x8] sm:$0xff]
        %v360 = vld [vmem:[%s357 + $0x10] sm:$0xff]
        %v361 = vld [vmem:[%s357 + $0x18] sm:$0xff]
        %362 = vmatprep.subr.mxu0 0.0
        %363 = vmatpush1.msra.mxu0 0.0
        %364 = vmatprep.subr.mxu0 0.0
        %365 = vmatpush1.msra.mxu0 0.0
        %366 = vmatprep.subr.mxu0 0.0
        %367 = vmatpush1.msra.mxu0 0.0
        %368 = vmatprep.subr.mxu0 0.0
        %369 = vmatpush1.msra.mxu0 0.0
        %370 = vmatprep.subr.mxu0 0.0
        %371 = vmatpush1.msra.mxu0 0.0
        %372 = vmatprep.subr.mxu0 0.0
        %373 = vmatpush1.msra.mxu0 0.0
        %374 = vmatprep.subr.mxu0 0.0
        %375 = vmatpush1.msra.mxu0 0.0
        %376 = vmatprep.subr.mxu0 0.0
        %377 = vmatpush1.msra.mxu0 0.0
        %378 = vmatprep.subr.mxu0 0.0
        %379 = vmatpush1.msra.mxu0 0.0
        %380 = vmatprep.subr.mxu0 0.0
        %381 = vmatpush1.msra.mxu0 0.0
        %382 = vmatprep.subr.mxu0 0.0
        %383 = vmatpush1.msra.mxu0 0.0
        %384 = vmatprep.subr.mxu0 0.0
        %385 = vmatpush1.msra.mxu0 0.0
        %386 = vmatprep.subr.mxu0 0.0
        %387 = vmatpush1.msra.mxu0 %v361
        %388 = vmatprep.subr.mxu0 0.0
        %389 = vmatpush1.msra.mxu0 %v360
        %390 = vmatprep.subr.mxu0 0.0
        %391 = vmatpush1.msra.mxu0 %v359
        %392 = vmatprep.subr.mxu0 0.0
        %393 = vmatpush1.msra.mxu0 %v358
        %394 = vmatprep.subr.mxu0 0.0
        %395 = vmatpush2.msra.mxu0 0.0
        %396 = vmatprep.subr.mxu0 0.0
        %397 = vmatpush2.msra.mxu0 0.0
        %398 = vmatprep.subr.mxu0 0.0
        %399 = vmatpush2.msra.mxu0 0.0
        %400 = vmatprep.subr.mxu0 0.0
        %401 = vmatpush2.msra.mxu0 0.0
        %402 = vmatprep.subr.mxu0 0.0
        %403 = vmatpush2.msra.mxu0 0.0
        %404 = vmatprep.subr.mxu0 0.0
        %405 = vmatpush2.msra.mxu0 0.0
        %406 = vmatprep.subr.mxu0 0.0
        %407 = vmatpush2.msra.mxu0 0.0
        %408 = vmatprep.subr.mxu0 0.0
        %409 = vmatpush2.msra.mxu0 0.0
        %410 = vmatprep.subr.mxu0 0.0
        %411 = vmatpush2.msra.mxu0 0.0
        %412 = vmatprep.subr.mxu0 0.0
        %413 = vmatpush2.msra.mxu0 0.0
        %414 = vmatprep.subr.mxu0 0.0
        %415 = vmatpush2.msra.mxu0 0.0
        %416 = vmatprep.subr.mxu0 0.0
        %417 = vmatpush2.msra.mxu0 0.0
        %418 = vmatprep.subr.mxu0 0.0
        %419 = vmatpush2.msra.mxu0 0.0
        %420 = vmatprep.subr.mxu0 0.0
        %421 = vmatpush2.msra.mxu0 0.0
        %422 = vmatprep.subr.mxu0 0.0
        %423 = vmatpush2.msra.mxu0 0.0
        %424 = vmatprep.subr.mxu0 0.0
        %425 = vmatpush2.msra.mxu0 0.0
        %426 = vmatprep.mubr.f32.mxu0 0.0
        %427 = vmatmul.mubr.f32.gmra.mxu0 %v210
        %v428 = vpop.f32.mrf.mxu0
        %v429 = vadd.f32 0.0, %v428
        %v430 = vpop.f32.mrf.mxu0
        %431 = vdwg.mxu0
        %s432 = scalar_lea.vmem %s1, 96
        %v433 = vld [vmem:[%s432] sm:$0xff]
        %v434 = vld [vmem:[%s432 + $0x8] sm:$0xff]
        %v435 = vld [vmem:[%s432 + $0x10] sm:$0xff]
        %v436 = vld [vmem:[%s432 + $0x18] sm:$0xff]
        %437 = vmatprep.subr.mxu0 0.0
        %438 = vmatpush1.msra.mxu0 0.0
        %439 = vmatprep.subr.mxu0 0.0
        %440 = vmatpush1.msra.mxu0 0.0
        %441 = vmatprep.subr.mxu0 0.0
        %442 = vmatpush1.msra.mxu0 0.0
        %443 = vmatprep.subr.mxu0 0.0
        %444 = vmatpush1.msra.mxu0 0.0
        %445 = vmatprep.subr.mxu0 0.0
        %446 = vmatpush1.msra.mxu0 0.0
        %447 = vmatprep.subr.mxu0 0.0
        %448 = vmatpush1.msra.mxu0 0.0
        %449 = vmatprep.subr.mxu0 0.0
        %450 = vmatpush1.msra.mxu0 0.0
        %451 = vmatprep.subr.mxu0 0.0
        %452 = vmatpush1.msra.mxu0 0.0
        %453 = vmatprep.subr.mxu0 0.0
        %454 = vmatpush1.msra.mxu0 0.0
        %455 = vmatprep.subr.mxu0 0.0
        %456 = vmatpush1.msra.mxu0 0.0
        %457 = vmatprep.subr.mxu0 0.0
        %458 = vmatpush1.msra.mxu0 0.0
        %459 = vmatprep.subr.mxu0 0.0
        %460 = vmatpush1.msra.mxu0 0.0
        %461 = vmatprep.subr.mxu0 0.0
        %462 = vmatpush1.msra.mxu0 %v436
        %463 = vmatprep.subr.mxu0 0.0
        %464 = vmatpush1.msra.mxu0 %v435
        %465 = vmatprep.subr.mxu0 0.0
        %466 = vmatpush1.msra.mxu0 %v434
        %467 = vmatprep.subr.mxu0 0.0
        %468 = vmatpush1.msra.mxu0 %v433
        %469 = vmatprep.subr.mxu0 0.0
        %470 = vmatpush2.msra.mxu0 0.0
        %471 = vmatprep.subr.mxu0 0.0
        %472 = vmatpush2.msra.mxu0 0.0
        %473 = vmatprep.subr.mxu0 0.0
        %474 = vmatpush2.msra.mxu0 0.0
        %475 = vmatprep.subr.mxu0 0.0
        %476 = vmatpush2.msra.mxu0 0.0
        %477 = vmatprep.subr.mxu0 0.0
        %478 = vmatpush2.msra.mxu0 0.0
        %479 = vmatprep.subr.mxu0 0.0
        %480 = vmatpush2.msra.mxu0 0.0
        %481 = vmatprep.subr.mxu0 0.0
        %482 = vmatpush2.msra.mxu0 0.0
        %483 = vmatprep.subr.mxu0 0.0
        %484 = vmatpush2.msra.mxu0 0.0
        %485 = vmatprep.subr.mxu0 0.0
        %486 = vmatpush2.msra.mxu0 0.0
        %487 = vmatprep.subr.mxu0 0.0
        %488 = vmatpush2.msra.mxu0 0.0
        %489 = vmatprep.subr.mxu0 0.0
        %490 = vmatpush2.msra.mxu0 0.0
        %491 = vmatprep.subr.mxu0 0.0
        %492 = vmatpush2.msra.mxu0 0.0
        %493 = vmatprep.subr.mxu0 0.0
        %494 = vmatpush2.msra.mxu0 0.0
        %495 = vmatprep.subr.mxu0 0.0
        %496 = vmatpush2.msra.mxu0 0.0
        %497 = vmatprep.subr.mxu0 0.0
        %498 = vmatpush2.msra.mxu0 0.0
        %499 = vmatprep.subr.mxu0 0.0
        %500 = vmatpush2.msra.mxu0 0.0
        %501 = vmatprep.mubr.f32.mxu0 0.0
        %502 = vmatmul.mubr.f32.gmra.mxu0 %v210
        %v503 = vpop.f32.mrf.mxu0
        %v504 = vadd.f32 0.0, %v503
        %v505 = vpop.f32.mrf.mxu0
        %506 = vdwg.mxu0
        %v507 = vmul.f32 %v279, 0.17677669
        %v508 = vmul.f32 %v354, 0.17677669
        %v509 = vmul.f32 %v429, 0.17677669
        %v510 = vmul.f32 %v504, 0.17677669
        %s511 = scalar_lea.vmem %s1, 128
        %v512 = vld [vmem:[%s511] sm:$0xff]
        %v513 = vld [vmem:[%s511 + $0x8] sm:$0xff]
        %v514 = vld [vmem:[%s511 + $0x10] sm:$0xff]
        %v515 = vld [vmem:[%s511 + $0x18] sm:$0xff]
        %516 = vmatprep.subr.mxu0 0.0
        %517 = vmatpush1.msra.mxu0 0.0
        %518 = vmatprep.subr.mxu0 0.0
        %519 = vmatpush1.msra.mxu0 0.0
        %520 = vmatprep.subr.mxu0 0.0
        %521 = vmatpush1.msra.mxu0 0.0
        %522 = vmatprep.subr.mxu0 0.0
        %523 = vmatpush1.msra.mxu0 0.0
        %524 = vmatprep.subr.mxu0 0.0
        %525 = vmatpush1.msra.mxu0 0.0
        %526 = vmatprep.subr.mxu0 0.0
        %527 = vmatpush1.msra.mxu0 0.0
        %528 = vmatprep.subr.mxu0 0.0
        %529 = vmatpush1.msra.mxu0 0.0
        %530 = vmatprep.subr.mxu0 0.0
        %531 = vmatpush1.msra.mxu0 0.0
        %532 = vmatprep.subr.mxu0 0.0
        %533 = vmatpush1.msra.mxu0 0.0
        %534 = vmatprep.subr.mxu0 0.0
        %535 = vmatpush1.msra.mxu0 0.0
        %536 = vmatprep.subr.mxu0 0.0
        %537 = vmatpush1.msra.mxu0 0.0
        %538 = vmatprep.subr.mxu0 0.0
        %539 = vmatpush1.msra.mxu0 0.0
        %540 = vmatprep.subr.mxu0 0.0
        %541 = vmatpush1.msra.mxu0 %v515
        %542 = vmatprep.subr.mxu0 0.0
        %543 = vmatpush1.msra.mxu0 %v514
        %544 = vmatprep.subr.mxu0 0.0
        %545 = vmatpush1.msra.mxu0 %v513
        %546 = vmatprep.subr.mxu0 0.0
        %547 = vmatpush1.msra.mxu0 %v512
        %548 = vmatprep.subr.mxu0 0.0
        %549 = vmatpush2.msra.mxu0 0.0
        %550 = vmatprep.subr.mxu0 0.0
        %551 = vmatpush2.msra.mxu0 0.0
        %552 = vmatprep.subr.mxu0 0.0
        %553 = vmatpush2.msra.mxu0 0.0
        %554 = vmatprep.subr.mxu0 0.0
        %555 = vmatpush2.msra.mxu0 0.0
        %556 = vmatprep.subr.mxu0 0.0
        %557 = vmatpush2.msra.mxu0 0.0
        %558 = vmatprep.subr.mxu0 0.0
        %559 = vmatpush2.msra.mxu0 0.0
        %560 = vmatprep.subr.mxu0 0.0
        %561 = vmatpush2.msra.mxu0 0.0
        %562 = vmatprep.subr.mxu0 0.0
        %563 = vmatpush2.msra.mxu0 0.0
        %564 = vmatprep.subr.mxu0 0.0
        %565 = vmatpush2.msra.mxu0 0.0
        %566 = vmatprep.subr.mxu0 0.0
        %567 = vmatpush2.msra.mxu0 0.0
        %568 = vmatprep.subr.mxu0 0.0
        %569 = vmatpush2.msra.mxu0 0.0
        %570 = vmatprep.subr.mxu0 0.0
        %571 = vmatpush2.msra.mxu0 0.0
        %572 = vmatprep.subr.mxu0 0.0
        %573 = vmatpush2.msra.mxu0 0.0
        %574 = vmatprep.subr.mxu0 0.0
        %575 = vmatpush2.msra.mxu0 0.0
        %576 = vmatprep.subr.mxu0 0.0
        %577 = vmatpush2.msra.mxu0 0.0
        %578 = vmatprep.subr.mxu0 0.0
        %579 = vmatpush2.msra.mxu0 0.0
        %580 = vmatprep.mubr.f32.mxu0 0.0
        %581 = vmatmul.mubr.f32.gmra.mxu0 %v210
        %v582 = vpop.f32.mrf.mxu0
        %v583 = vadd.f32 0.0, %v582
        %v584 = vpop.f32.mrf.mxu0
        %585 = vdwg.mxu0
        %s586 = scalar_lea.vmem %s1, 160
        %v587 = vld [vmem:[%s586] sm:$0xff]
        %v588 = vld [vmem:[%s586 + $0x8] sm:$0xff]
        %v589 = vld [vmem:[%s586 + $0x10] sm:$0xff]
        %v590 = vld [vmem:[%s586 + $0x18] sm:$0xff]
        %591 = vmatprep.subr.mxu0 0.0
        %592 = vmatpush1.msra.mxu0 0.0
        %593 = vmatprep.subr.mxu0 0.0
        %594 = vmatpush1.msra.mxu0 0.0
        %595 = vmatprep.subr.mxu0 0.0
        %596 = vmatpush1.msra.mxu0 0.0
        %597 = vmatprep.subr.mxu0 0.0
        %598 = vmatpush1.msra.mxu0 0.0
        %599 = vmatprep.subr.mxu0 0.0
        %600 = vmatpush1.msra.mxu0 0.0
        %601 = vmatprep.subr.mxu0 0.0
        %602 = vmatpush1.msra.mxu0 0.0
        %603 = vmatprep.subr.mxu0 0.0
        %604 = vmatpush1.msra.mxu0 0.0
        %605 = vmatprep.subr.mxu0 0.0
        %606 = vmatpush1.msra.mxu0 0.0
        %607 = vmatprep.subr.mxu0 0.0
        %608 = vmatpush1.msra.mxu0 0.0
        %609 = vmatprep.subr.mxu0 0.0
        %610 = vmatpush1.msra.mxu0 0.0
        %611 = vmatprep.subr.mxu0 0.0
        %612 = vmatpush1.msra.mxu0 0.0
        %613 = vmatprep.subr.mxu0 0.0
        %614 = vmatpush1.msra.mxu0 0.0
        %615 = vmatprep.subr.mxu0 0.0
        %616 = vmatpush1.msra.mxu0 %v590
        %617 = vmatprep.subr.mxu0 0.0
        %618 = vmatpush1.msra.mxu0 %v589
        %619 = vmatprep.subr.mxu0 0.0
        %620 = vmatpush1.msra.mxu0 %v588
        %621 = vmatprep.subr.mxu0 0.0
        %622 = vmatpush1.msra.mxu0 %v587
        %623 = vmatprep.subr.mxu0 0.0
        %624 = vmatpush2.msra.mxu0 0.0
        %625 = vmatprep.subr.mxu0 0.0
        %626 = vmatpush2.msra.mxu0 0.0
        %627 = vmatprep.subr.mxu0 0.0
        %628 = vmatpush2.msra.mxu0 0.0
        %629 = vmatprep.subr.mxu0 0.0
        %630 = vmatpush2.msra.mxu0 0.0
        %631 = vmatprep.subr.mxu0 0.0
        %632 = vmatpush2.msra.mxu0 0.0
        %633 = vmatprep.subr.mxu0 0.0
        %634 = vmatpush2.msra.mxu0 0.0
        %635 = vmatprep.subr.mxu0 0.0
        %636 = vmatpush2.msra.mxu0 0.0
        %637 = vmatprep.subr.mxu0 0.0
        %638 = vmatpush2.msra.mxu0 0.0
        %639 = vmatprep.subr.mxu0 0.0
        %640 = vmatpush2.msra.mxu0 0.0
        %641 = vmatprep.subr.mxu0 0.0
        %642 = vmatpush2.msra.mxu0 0.0
        %643 = vmatprep.subr.mxu0 0.0
        %644 = vmatpush2.msra.mxu0 0.0
        %645 = vmatprep.subr.mxu0 0.0
        %646 = vmatpush2.msra.mxu0 0.0
        %647 = vmatprep.subr.mxu0 0.0
        %648 = vmatpush2.msra.mxu0 0.0
        %649 = vmatprep.subr.mxu0 0.0
        %650 = vmatpush2.msra.mxu0 0.0
        %651 = vmatprep.subr.mxu0 0.0
        %652 = vmatpush2.msra.mxu0 0.0
        %653 = vmatprep.subr.mxu0 0.0
        %654 = vmatpush2.msra.mxu0 0.0
        %655 = vmatprep.mubr.f32.mxu0 0.0
        %656 = vmatmul.mubr.f32.gmra.mxu0 %v210
        %v657 = vpop.f32.mrf.mxu0
        %v658 = vadd.f32 0.0, %v657
        %v659 = vpop.f32.mrf.mxu0
        %660 = vdwg.mxu0
        %s661 = scalar_lea.vmem %s1, 192
        %v662 = vld [vmem:[%s661] sm:$0xff]
        %v663 = vld [vmem:[%s661 + $0x8] sm:$0xff]
        %v664 = vld [vmem:[%s661 + $0x10] sm:$0xff]
        %v665 = vld [vmem:[%s661 + $0x18] sm:$0xff]
        %666 = vmatprep.subr.mxu0 0.0
        %667 = vmatpush1.msra.mxu0 0.0
        %668 = vmatprep.subr.mxu0 0.0
        %669 = vmatpush1.msra.mxu0 0.0
        %670 = vmatprep.subr.mxu0 0.0
        %671 = vmatpush1.msra.mxu0 0.0
        %672 = vmatprep.subr.mxu0 0.0
        %673 = vmatpush1.msra.mxu0 0.0
        %674 = vmatprep.subr.mxu0 0.0
        %675 = vmatpush1.msra.mxu0 0.0
        %676 = vmatprep.subr.mxu0 0.0
        %677 = vmatpush1.msra.mxu0 0.0
        %678 = vmatprep.subr.mxu0 0.0
        %679 = vmatpush1.msra.mxu0 0.0
        %680 = vmatprep.subr.mxu0 0.0
        %681 = vmatpush1.msra.mxu0 0.0
        %682 = vmatprep.subr.mxu0 0.0
        %683 = vmatpush1.msra.mxu0 0.0
        %684 = vmatprep.subr.mxu0 0.0
        %685 = vmatpush1.msra.mxu0 0.0
        %686 = vmatprep.subr.mxu0 0.0
        %687 = vmatpush1.msra.mxu0 0.0
        %688 = vmatprep.subr.mxu0 0.0
        %689 = vmatpush1.msra.mxu0 0.0
        %690 = vmatprep.subr.mxu0 0.0
        %691 = vmatpush1.msra.mxu0 %v665
        %692 = vmatprep.subr.mxu0 0.0
        %693 = vmatpush1.msra.mxu0 %v664
        %694 = vmatprep.subr.mxu0 0.0
        %695 = vmatpush1.msra.mxu0 %v663
        %696 = vmatprep.subr.mxu0 0.0
        %697 = vmatpush1.msra.mxu0 %v662
        %698 = vmatprep.subr.mxu0 0.0
        %699 = vmatpush2.msra.mxu0 0.0
        %700 = vmatprep.subr.mxu0 0.0
        %701 = vmatpush2.msra.mxu0 0.0
        %702 = vmatprep.subr.mxu0 0.0
        %703 = vmatpush2.msra.mxu0 0.0
        %704 = vmatprep.subr.mxu0 0.0
        %705 = vmatpush2.msra.mxu0 0.0
        %706 = vmatprep.subr.mxu0 0.0
        %707 = vmatpush2.msra.mxu0 0.0
        %708 = vmatprep.subr.mxu0 0.0
        %709 = vmatpush2.msra.mxu0 0.0
        %710 = vmatprep.subr.mxu0 0.0
        %711 = vmatpush2.msra.mxu0 0.0
        %712 = vmatprep.subr.mxu0 0.0
        %713 = vmatpush2.msra.mxu0 0.0
        %714 = vmatprep.subr.mxu0 0.0
        %715 = vmatpush2.msra.mxu0 0.0
        %716 = vmatprep.subr.mxu0 0.0
        %717 = vmatpush2.msra.mxu0 0.0
        %718 = vmatprep.subr.mxu0 0.0
        %719 = vmatpush2.msra.mxu0 0.0
        %720 = vmatprep.subr.mxu0 0.0
        %721 = vmatpush2.msra.mxu0 0.0
        %722 = vmatprep.subr.mxu0 0.0
        %723 = vmatpush2.msra.mxu0 0.0
        %724 = vmatprep.subr.mxu0 0.0
        %725 = vmatpush2.msra.mxu0 0.0
        %726 = vmatprep.subr.mxu0 0.0
        %727 = vmatpush2.msra.mxu0 0.0
        %728 = vmatprep.subr.mxu0 0.0
        %729 = vmatpush2.msra.mxu0 0.0
        %730 = vmatprep.mubr.f32.mxu0 0.0
        %731 = vmatmul.mubr.f32.gmra.mxu0 %v210
        %v732 = vpop.f32.mrf.mxu0
        %v733 = vadd.f32 0.0, %v732
        %v734 = vpop.f32.mrf.mxu0
        %735 = vdwg.mxu0
        %s736 = scalar_lea.vmem %s1, 224
        %v737 = vld [vmem:[%s736] sm:$0xff]
        %v738 = vld [vmem:[%s736 + $0x8] sm:$0xff]
        %v739 = vld [vmem:[%s736 + $0x10] sm:$0xff]
        %v740 = vld [vmem:[%s736 + $0x18] sm:$0xff]
        %741 = vmatprep.subr.mxu0 0.0
        %742 = vmatpush1.msra.mxu0 0.0
        %743 = vmatprep.subr.mxu0 0.0
        %744 = vmatpush1.msra.mxu0 0.0
        %745 = vmatprep.subr.mxu0 0.0
        %746 = vmatpush1.msra.mxu0 0.0
        %747 = vmatprep.subr.mxu0 0.0
        %748 = vmatpush1.msra.mxu0 0.0
        %749 = vmatprep.subr.mxu0 0.0
        %750 = vmatpush1.msra.mxu0 0.0
        %751 = vmatprep.subr.mxu0 0.0
        %752 = vmatpush1.msra.mxu0 0.0
        %753 = vmatprep.subr.mxu0 0.0
        %754 = vmatpush1.msra.mxu0 0.0
        %755 = vmatprep.subr.mxu0 0.0
        %756 = vmatpush1.msra.mxu0 0.0
        %757 = vmatprep.subr.mxu0 0.0
        %758 = vmatpush1.msra.mxu0 0.0
        %759 = vmatprep.subr.mxu0 0.0
        %760 = vmatpush1.msra.mxu0 0.0
        %761 = vmatprep.subr.mxu0 0.0
        %762 = vmatpush1.msra.mxu0 0.0
        %763 = vmatprep.subr.mxu0 0.0
        %764 = vmatpush1.msra.mxu0 0.0
        %765 = vmatprep.subr.mxu0 0.0
        %766 = vmatpush1.msra.mxu0 %v740
        %767 = vmatprep.subr.mxu0 0.0
        %768 = vmatpush1.msra.mxu0 %v739
        %769 = vmatprep.subr.mxu0 0.0
        %770 = vmatpush1.msra.mxu0 %v738
        %771 = vmatprep.subr.mxu0 0.0
        %772 = vmatpush1.msra.mxu0 %v737
        %773 = vmatprep.subr.mxu0 0.0
        %774 = vmatpush2.msra.mxu0 0.0
        %775 = vmatprep.subr.mxu0 0.0
        %776 = vmatpush2.msra.mxu0 0.0
        %777 = vmatprep.subr.mxu0 0.0
        %778 = vmatpush2.msra.mxu0 0.0
        %779 = vmatprep.subr.mxu0 0.0
        %780 = vmatpush2.msra.mxu0 0.0
        %781 = vmatprep.subr.mxu0 0.0
        %782 = vmatpush2.msra.mxu0 0.0
        %783 = vmatprep.subr.mxu0 0.0
        %784 = vmatpush2.msra.mxu0 0.0
        %785 = vmatprep.subr.mxu0 0.0
        %786 = vmatpush2.msra.mxu0 0.0
        %787 = vmatprep.subr.mxu0 0.0
        %788 = vmatpush2.msra.mxu0 0.0
        %789 = vmatprep.subr.mxu0 0.0
        %790 = vmatpush2.msra.mxu0 0.0
        %791 = vmatprep.subr.mxu0 0.0
        %792 = vmatpush2.msra.mxu0 0.0
        %793 = vmatprep.subr.mxu0 0.0
        %794 = vmatpush2.msra.mxu0 0.0
        %795 = vmatprep.subr.mxu0 0.0
        %796 = vmatpush2.msra.mxu0 0.0
        %797 = vmatprep.subr.mxu0 0.0
        %798 = vmatpush2.msra.mxu0 0.0
        %799 = vmatprep.subr.mxu0 0.0
        %800 = vmatpush2.msra.mxu0 0.0
        %801 = vmatprep.subr.mxu0 0.0
        %802 = vmatpush2.msra.mxu0 0.0
        %803 = vmatprep.subr.mxu0 0.0
        %804 = vmatpush2.msra.mxu0 0.0
        %805 = vmatprep.mubr.f32.mxu0 0.0
        %806 = vmatmul.mubr.f32.gmra.mxu0 %v210
        %v807 = vpop.f32.mrf.mxu0
        %v808 = vadd.f32 0.0, %v807
        %v809 = vpop.f32.mrf.mxu0
        %810 = vdwg.mxu0
        %s811 = scalar_lea.vmem %s1, 256
        %v812 = vld [vmem:[%s811] sm:$0xff]
        %v813 = vld [vmem:[%s811 + $0x8] sm:$0xff]
        %v814 = vld [vmem:[%s811 + $0x10] sm:$0xff]
        %v815 = vld [vmem:[%s811 + $0x18] sm:$0xff]
        %816 = vmatprep.subr.mxu0 0.0
        %817 = vmatpush1.msra.mxu0 0.0
        %818 = vmatprep.subr.mxu0 0.0
        %819 = vmatpush1.msra.mxu0 0.0
        %820 = vmatprep.subr.mxu0 0.0
        %821 = vmatpush1.msra.mxu0 0.0
        %822 = vmatprep.subr.mxu0 0.0
        %823 = vmatpush1.msra.mxu0 0.0
        %824 = vmatprep.subr.mxu0 0.0
        %825 = vmatpush1.msra.mxu0 0.0
        %826 = vmatprep.subr.mxu0 0.0
        %827 = vmatpush1.msra.mxu0 0.0
        %828 = vmatprep.subr.mxu0 0.0
        %829 = vmatpush1.msra.mxu0 0.0
        %830 = vmatprep.subr.mxu0 0.0
        %831 = vmatpush1.msra.mxu0 0.0
        %832 = vmatprep.subr.mxu0 0.0
        %833 = vmatpush1.msra.mxu0 0.0
        %834 = vmatprep.subr.mxu0 0.0
        %835 = vmatpush1.msra.mxu0 0.0
        %836 = vmatprep.subr.mxu0 0.0
        %837 = vmatpush1.msra.mxu0 0.0
        %838 = vmatprep.subr.mxu0 0.0
        %839 = vmatpush1.msra.mxu0 0.0
        %840 = vmatprep.subr.mxu0 0.0
        %841 = vmatpush1.msra.mxu0 %v815
        %842 = vmatprep.subr.mxu0 0.0
        %843 = vmatpush1.msra.mxu0 %v814
        %844 = vmatprep.subr.mxu0 0.0
        %845 = vmatpush1.msra.mxu0 %v813
        %846 = vmatprep.subr.mxu0 0.0
        %847 = vmatpush1.msra.mxu0 %v812
        %848 = vmatprep.subr.mxu0 0.0
        %849 = vmatpush2.msra.mxu0 0.0
        %850 = vmatprep.subr.mxu0 0.0
        %851 = vmatpush2.msra.mxu0 0.0
        %852 = vmatprep.subr.mxu0 0.0
        %853 = vmatpush2.msra.mxu0 0.0
        %854 = vmatprep.subr.mxu0 0.0
        %855 = vmatpush2.msra.mxu0 0.0
        %856 = vmatprep.subr.mxu0 0.0
        %857 = vmatpush2.msra.mxu0 0.0
        %858 = vmatprep.subr.mxu0 0.0
        %859 = vmatpush2.msra.mxu0 0.0
        %860 = vmatprep.subr.mxu0 0.0
        %861 = vmatpush2.msra.mxu0 0.0
        %862 = vmatprep.subr.mxu0 0.0
        %863 = vmatpush2.msra.mxu0 0.0
        %864 = vmatprep.subr.mxu0 0.0
        %865 = vmatpush2.msra.mxu0 0.0
        %866 = vmatprep.subr.mxu0 0.0
        %867 = vmatpush2.msra.mxu0 0.0
        %868 = vmatprep.subr.mxu0 0.0
        %869 = vmatpush2.msra.mxu0 0.0
        %870 = vmatprep.subr.mxu0 0.0
        %871 = vmatpush2.msra.mxu0 0.0
        %872 = vmatprep.subr.mxu0 0.0
        %873 = vmatpush2.msra.mxu0 0.0
        %874 = vmatprep.subr.mxu0 0.0
        %875 = vmatpush2.msra.mxu0 0.0
        %876 = vmatprep.subr.mxu0 0.0
        %877 = vmatpush2.msra.mxu0 0.0
        %878 = vmatprep.subr.mxu0 0.0
        %879 = vmatpush2.msra.mxu0 0.0
        %880 = vmatprep.mubr.f32.mxu0 0.0
        %881 = vmatmul.mubr.f32.gmra.mxu0 %v210
        %v882 = vpop.f32.mrf.mxu0
        %v883 = vadd.f32 0.0, %v882
        %v884 = vpop.f32.mrf.mxu0
        %885 = vdwg.mxu0
        %s886 = scalar_lea.vmem %s1, 288
        %v887 = vld [vmem:[%s886] sm:$0xff]
        %v888 = vld [vmem:[%s886 + $0x8] sm:$0xff]
        %v889 = vld [vmem:[%s886 + $0x10] sm:$0xff]
        %v890 = vld [vmem:[%s886 + $0x18] sm:$0xff]
        %891 = vmatprep.subr.mxu0 0.0
        %892 = vmatpush1.msra.mxu0 0.0
        %893 = vmatprep.subr.mxu0 0.0
        %894 = vmatpush1.msra.mxu0 0.0
        %895 = vmatprep.subr.mxu0 0.0
        %896 = vmatpush1.msra.mxu0 0.0
        %897 = vmatprep.subr.mxu0 0.0
        %898 = vmatpush1.msra.mxu0 0.0
        %899 = vmatprep.subr.mxu0 0.0
        %900 = vmatpush1.msra.mxu0 0.0
        %901 = vmatprep.subr.mxu0 0.0
        %902 = vmatpush1.msra.mxu0 0.0
        %903 = vmatprep.subr.mxu0 0.0
        %904 = vmatpush1.msra.mxu0 0.0
        %905 = vmatprep.subr.mxu0 0.0
        %906 = vmatpush1.msra.mxu0 0.0
        %907 = vmatprep.subr.mxu0 0.0
        %908 = vmatpush1.msra.mxu0 0.0
        %909 = vmatprep.subr.mxu0 0.0
        %910 = vmatpush1.msra.mxu0 0.0
        %911 = vmatprep.subr.mxu0 0.0
        %912 = vmatpush1.msra.mxu0 0.0
        %913 = vmatprep.subr.mxu0 0.0
        %914 = vmatpush1.msra.mxu0 0.0
        %915 = vmatprep.subr.mxu0 0.0
        %916 = vmatpush1.msra.mxu0 %v890
        %917 = vmatprep.subr.mxu0 0.0
        %918 = vmatpush1.msra.mxu0 %v889
        %919 = vmatprep.subr.mxu0 0.0
        %920 = vmatpush1.msra.mxu0 %v888
        %921 = vmatprep.subr.mxu0 0.0
        %922 = vmatpush1.msra.mxu0 %v887
        %923 = vmatprep.subr.mxu0 0.0
        %924 = vmatpush2.msra.mxu0 0.0
        %925 = vmatprep.subr.mxu0 0.0
        %926 = vmatpush2.msra.mxu0 0.0
        %927 = vmatprep.subr.mxu0 0.0
        %928 = vmatpush2.msra.mxu0 0.0
        %929 = vmatprep.subr.mxu0 0.0
        %930 = vmatpush2.msra.mxu0 0.0
        %931 = vmatprep.subr.mxu0 0.0
        %932 = vmatpush2.msra.mxu0 0.0
        %933 = vmatprep.subr.mxu0 0.0
        %934 = vmatpush2.msra.mxu0 0.0
        %935 = vmatprep.subr.mxu0 0.0
        %936 = vmatpush2.msra.mxu0 0.0
        %937 = vmatprep.subr.mxu0 0.0
        %938 = vmatpush2.msra.mxu0 0.0
        %939 = vmatprep.subr.mxu0 0.0
        %940 = vmatpush2.msra.mxu0 0.0
        %941 = vmatprep.subr.mxu0 0.0
        %942 = vmatpush2.msra.mxu0 0.0
        %943 = vmatprep.subr.mxu0 0.0
        %944 = vmatpush2.msra.mxu0 0.0
        %945 = vmatprep.subr.mxu0 0.0
        %946 = vmatpush2.msra.mxu0 0.0
        %947 = vmatprep.subr.mxu0 0.0
        %948 = vmatpush2.msra.mxu0 0.0
        %949 = vmatprep.subr.mxu0 0.0
        %950 = vmatpush2.msra.mxu0 0.0
        %951 = vmatprep.subr.mxu0 0.0
        %952 = vmatpush2.msra.mxu0 0.0
        %953 = vmatprep.subr.mxu0 0.0
        %954 = vmatpush2.msra.mxu0 0.0
        %955 = vmatprep.mubr.f32.mxu0 0.0
        %956 = vmatmul.mubr.f32.gmra.mxu0 %v210
        %v957 = vpop.f32.mrf.mxu0
        %v958 = vadd.f32 0.0, %v957
        %v959 = vpop.f32.mrf.mxu0
        %960 = vdwg.mxu0
        %s961 = scalar_lea.vmem %s1, 320
        %v962 = vld [vmem:[%s961] sm:$0xff]
        %v963 = vld [vmem:[%s961 + $0x8] sm:$0xff]
        %v964 = vld [vmem:[%s961 + $0x10] sm:$0xff]
        %v965 = vld [vmem:[%s961 + $0x18] sm:$0xff]
        %966 = vmatprep.subr.mxu0 0.0
        %967 = vmatpush1.msra.mxu0 0.0
        %968 = vmatprep.subr.mxu0 0.0
        %969 = vmatpush1.msra.mxu0 0.0
        %970 = vmatprep.subr.mxu0 0.0
        %971 = vmatpush1.msra.mxu0 0.0
        %972 = vmatprep.subr.mxu0 0.0
        %973 = vmatpush1.msra.mxu0 0.0
        %974 = vmatprep.subr.mxu0 0.0
        %975 = vmatpush1.msra.mxu0 0.0
        %976 = vmatprep.subr.mxu0 0.0
        %977 = vmatpush1.msra.mxu0 0.0
        %978 = vmatprep.subr.mxu0 0.0
        %979 = vmatpush1.msra.mxu0 0.0
        %980 = vmatprep.subr.mxu0 0.0
        %981 = vmatpush1.msra.mxu0 0.0
        %982 = vmatprep.subr.mxu0 0.0
        %983 = vmatpush1.msra.mxu0 0.0
        %984 = vmatprep.subr.mxu0 0.0
        %985 = vmatpush1.msra.mxu0 0.0
        %986 = vmatprep.subr.mxu0 0.0
        %987 = vmatpush1.msra.mxu0 0.0
        %988 = vmatprep.subr.mxu0 0.0
        %989 = vmatpush1.msra.mxu0 0.0
        %990 = vmatprep.subr.mxu0 0.0
        %991 = vmatpush1.msra.mxu0 %v965
        %992 = vmatprep.subr.mxu0 0.0
        %993 = vmatpush1.msra.mxu0 %v964
        %994 = vmatprep.subr.mxu0 0.0
        %995 = vmatpush1.msra.mxu0 %v963
        %996 = vmatprep.subr.mxu0 0.0
        %997 = vmatpush1.msra.mxu0 %v962
        %998 = vmatprep.subr.mxu0 0.0
        %999 = vmatpush2.msra.mxu0 0.0
        %1000 = vmatprep.subr.mxu0 0.0
        %1001 = vmatpush2.msra.mxu0 0.0
        %1002 = vmatprep.subr.mxu0 0.0
        %1003 = vmatpush2.msra.mxu0 0.0
        %1004 = vmatprep.subr.mxu0 0.0
        %1005 = vmatpush2.msra.mxu0 0.0
        %1006 = vmatprep.subr.mxu0 0.0
        %1007 = vmatpush2.msra.mxu0 0.0
        %1008 = vmatprep.subr.mxu0 0.0
        %1009 = vmatpush2.msra.mxu0 0.0
        %1010 = vmatprep.subr.mxu0 0.0
        %1011 = vmatpush2.msra.mxu0 0.0
        %1012 = vmatprep.subr.mxu0 0.0
        %1013 = vmatpush2.msra.mxu0 0.0
        %1014 = vmatprep.subr.mxu0 0.0
        %1015 = vmatpush2.msra.mxu0 0.0
        %1016 = vmatprep.subr.mxu0 0.0
        %1017 = vmatpush2.msra.mxu0 0.0
        %1018 = vmatprep.subr.mxu0 0.0
        %1019 = vmatpush2.msra.mxu0 0.0
        %1020 = vmatprep.subr.mxu0 0.0
        %1021 = vmatpush2.msra.mxu0 0.0
        %1022 = vmatprep.subr.mxu0 0.0
        %1023 = vmatpush2.msra.mxu0 0.0
        %1024 = vmatprep.subr.mxu0 0.0
        %1025 = vmatpush2.msra.mxu0 0.0
        %1026 = vmatprep.subr.mxu0 0.0
        %1027 = vmatpush2.msra.mxu0 0.0
        %1028 = vmatprep.subr.mxu0 0.0
        %1029 = vmatpush2.msra.mxu0 0.0
        %1030 = vmatprep.mubr.f32.mxu0 0.0
        %1031 = vmatmul.mubr.f32.gmra.mxu0 %v210
        %v1032 = vpop.f32.mrf.mxu0
        %v1033 = vadd.f32 0.0, %v1032
        %v1034 = vpop.f32.mrf.mxu0
        %1035 = vdwg.mxu0
        %s1036 = scalar_lea.vmem %s1, 352
        %v1037 = vld [vmem:[%s1036] sm:$0xff]
        %v1038 = vld [vmem:[%s1036 + $0x8] sm:$0xff]
        %v1039 = vld [vmem:[%s1036 + $0x10] sm:$0xff]
        %v1040 = vld [vmem:[%s1036 + $0x18] sm:$0xff]
        %1041 = vmatprep.subr.mxu0 0.0
        %1042 = vmatpush1.msra.mxu0 0.0
        %1043 = vmatprep.subr.mxu0 0.0
        %1044 = vmatpush1.msra.mxu0 0.0
        %1045 = vmatprep.subr.mxu0 0.0
        %1046 = vmatpush1.msra.mxu0 0.0
        %1047 = vmatprep.subr.mxu0 0.0
        %1048 = vmatpush1.msra.mxu0 0.0
        %1049 = vmatprep.subr.mxu0 0.0
        %1050 = vmatpush1.msra.mxu0 0.0
        %1051 = vmatprep.subr.mxu0 0.0
        %1052 = vmatpush1.msra.mxu0 0.0
        %1053 = vmatprep.subr.mxu0 0.0
        %1054 = vmatpush1.msra.mxu0 0.0
        %1055 = vmatprep.subr.mxu0 0.0
        %1056 = vmatpush1.msra.mxu0 0.0
        %1057 = vmatprep.subr.mxu0 0.0
        %1058 = vmatpush1.msra.mxu0 0.0
        %1059 = vmatprep.subr.mxu0 0.0
        %1060 = vmatpush1.msra.mxu0 0.0
        %1061 = vmatprep.subr.mxu0 0.0
        %1062 = vmatpush1.msra.mxu0 0.0
        %1063 = vmatprep.subr.mxu0 0.0
        %1064 = vmatpush1.msra.mxu0 0.0
        %1065 = vmatprep.subr.mxu0 0.0
        %1066 = vmatpush1.msra.mxu0 %v1040
        %1067 = vmatprep.subr.mxu0 0.0
        %1068 = vmatpush1.msra.mxu0 %v1039
        %1069 = vmatprep.subr.mxu0 0.0
        %1070 = vmatpush1.msra.mxu0 %v1038
        %1071 = vmatprep.subr.mxu0 0.0
        %1072 = vmatpush1.msra.mxu0 %v1037
        %1073 = vmatprep.subr.mxu0 0.0
        %1074 = vmatpush2.msra.mxu0 0.0
        %1075 = vmatprep.subr.mxu0 0.0
        %1076 = vmatpush2.msra.mxu0 0.0
        %1077 = vmatprep.subr.mxu0 0.0
        %1078 = vmatpush2.msra.mxu0 0.0
        %1079 = vmatprep.subr.mxu0 0.0
        %1080 = vmatpush2.msra.mxu0 0.0
        %1081 = vmatprep.subr.mxu0 0.0
        %1082 = vmatpush2.msra.mxu0 0.0
        %1083 = vmatprep.subr.mxu0 0.0
        %1084 = vmatpush2.msra.mxu0 0.0
        %1085 = vmatprep.subr.mxu0 0.0
        %1086 = vmatpush2.msra.mxu0 0.0
        %1087 = vmatprep.subr.mxu0 0.0
        %1088 = vmatpush2.msra.mxu0 0.0
        %1089 = vmatprep.subr.mxu0 0.0
        %1090 = vmatpush2.msra.mxu0 0.0
        %1091 = vmatprep.subr.mxu0 0.0
        %1092 = vmatpush2.msra.mxu0 0.0
        %1093 = vmatprep.subr.mxu0 0.0
        %1094 = vmatpush2.msra.mxu0 0.0
        %1095 = vmatprep.subr.mxu0 0.0
        %1096 = vmatpush2.msra.mxu0 0.0
        %1097 = vmatprep.subr.mxu0 0.0
        %1098 = vmatpush2.msra.mxu0 0.0
        %1099 = vmatprep.subr.mxu0 0.0
        %1100 = vmatpush2.msra.mxu0 0.0
        %1101 = vmatprep.subr.mxu0 0.0
        %1102 = vmatpush2.msra.mxu0 0.0
        %1103 = vmatprep.subr.mxu0 0.0
        %1104 = vmatpush2.msra.mxu0 0.0
        %1105 = vmatprep.mubr.f32.mxu0 0.0
        %1106 = vmatmul.mubr.f32.gmra.mxu0 %v210
        %v1107 = vpop.f32.mrf.mxu0
        %v1108 = vadd.f32 0.0, %v1107
        %v1109 = vpop.f32.mrf.mxu0
        %1110 = vdwg.mxu0
        %vm1111 = vcmask 64512
        %v1113 = vsel %vm1111, %v507, 0
        %v1116 = vsel %vm1111, %v583, 0
        %1118 = vmatprep.subr.mxu0 0.0
        %1119 = vmatpush1.xpose.msra.mxu0 0.0
        %1120 = vmatprep.subr.mxu0 0.0
        %1121 = vmatpush1.xpose.msra.mxu0 0.0
        %1122 = vmatprep.subr.mxu0 0.0
        %1123 = vmatpush1.xpose.msra.mxu0 0.0
        %1124 = vmatprep.subr.mxu0 0.0
        %1125 = vmatpush1.xpose.msra.mxu0 0.0
        %1126 = vmatprep.subr.mxu0 0.0
        %1127 = vmatpush1.xpose.msra.mxu0 0.0
        %1128 = vmatprep.subr.mxu0 0.0
        %1129 = vmatpush1.xpose.msra.mxu0 0.0
        %1130 = vmatprep.subr.mxu0 0.0
        %1131 = vmatpush1.xpose.msra.mxu0 0.0
        %1132 = vmatprep.subr.mxu0 0.0
        %1133 = vmatpush1.xpose.msra.mxu0 0.0
        %1134 = vmatprep.subr.mxu0 0.0
        %1135 = vmatpush1.xpose.msra.mxu0 0.0
        %1136 = vmatprep.subr.mxu0 0.0
        %1137 = vmatpush1.xpose.msra.mxu0 0.0
        %1138 = vmatprep.subr.mxu0 0.0
        %1139 = vmatpush1.xpose.msra.mxu0 0.0
        %1140 = vmatprep.subr.mxu0 0.0
        %1141 = vmatpush1.xpose.msra.mxu0 0.0
        %1142 = vmatprep.subr.mxu0 0.0
        %1143 = vmatpush1.xpose.msra.mxu0 0.0
        %1144 = vmatprep.subr.mxu0 0.0
        %1145 = vmatpush1.xpose.msra.mxu0 0.0
        %1146 = vmatprep.subr.mxu0 0.0
        %1147 = vmatpush1.xpose.msra.mxu0 0.0
        %1148 = vmatprep.subr.mxu0 0.0
        %1149 = vmatpush1.xpose.msra.mxu0 %v1116
        %1150 = vmatprep.subr.mxu0 0.0
        %1151 = vmatpush2.xpose.msra.mxu0 0.0
        %1152 = vmatprep.subr.mxu0 0.0
        %1153 = vmatpush2.xpose.msra.mxu0 0.0
        %1154 = vmatprep.subr.mxu0 0.0
        %1155 = vmatpush2.xpose.msra.mxu0 0.0
        %1156 = vmatprep.subr.mxu0 0.0
        %1157 = vmatpush2.xpose.msra.mxu0 0.0
        %1158 = vmatprep.subr.mxu0 0.0
        %1159 = vmatpush2.xpose.msra.mxu0 0.0
        %1160 = vmatprep.subr.mxu0 0.0
        %1161 = vmatpush2.xpose.msra.mxu0 0.0
        %1162 = vmatprep.subr.mxu0 0.0
        %1163 = vmatpush2.xpose.msra.mxu0 0.0
        %1164 = vmatprep.subr.mxu0 0.0
        %1165 = vmatpush2.xpose.msra.mxu0 0.0
        %1166 = vmatprep.subr.mxu0 0.0
        %1167 = vmatpush2.xpose.msra.mxu0 0.0
        %1168 = vmatprep.subr.mxu0 0.0
        %1169 = vmatpush2.xpose.msra.mxu0 0.0
        %1170 = vmatprep.subr.mxu0 0.0
        %1171 = vmatpush2.xpose.msra.mxu0 0.0
        %1172 = vmatprep.subr.mxu0 0.0
        %1173 = vmatpush2.xpose.msra.mxu0 0.0
        %1174 = vmatprep.subr.mxu0 0.0
        %1175 = vmatpush2.xpose.msra.mxu0 0.0
        %1176 = vmatprep.subr.mxu0 0.0
        %1177 = vmatpush2.xpose.msra.mxu0 0.0
        %1178 = vmatprep.subr.mxu0 0.0
        %1179 = vmatpush2.xpose.msra.mxu0 0.0
        %1180 = vmatprep.subr.mxu0 0.0
        %1181 = vmatpush2.xpose.msra.mxu0 0.0
        %1182 = vmatprep.mubr.f32.mxu0 0.0
        %1183 = vmatmul.mubr.f32.gmra.mxu0 %v1113
        %v1184 = vpop.f32.mrf.mxu0
        %v1185 = vadd.f32 0.0, %v1184
        %v1186 = vpop.f32.mrf.mxu0
        %1187 = vdwg.mxu0
        %v1189 = vsel %vm1111, %v508, 0
        %v1192 = vsel %vm1111, %v658, 0
        %1194 = vmatprep.subr.mxu0 0.0
        %1195 = vmatpush1.xpose.msra.mxu0 0.0
        %1196 = vmatprep.subr.mxu0 0.0
        %1197 = vmatpush1.xpose.msra.mxu0 0.0
        %1198 = vmatprep.subr.mxu0 0.0
        %1199 = vmatpush1.xpose.msra.mxu0 0.0
        %1200 = vmatprep.subr.mxu0 0.0
        %1201 = vmatpush1.xpose.msra.mxu0 0.0
        %1202 = vmatprep.subr.mxu0 0.0
        %1203 = vmatpush1.xpose.msra.mxu0 0.0
        %1204 = vmatprep.subr.mxu0 0.0
        %1205 = vmatpush1.xpose.msra.mxu0 0.0
        %1206 = vmatprep.subr.mxu0 0.0
        %1207 = vmatpush1.xpose.msra.mxu0 0.0
        %1208 = vmatprep.subr.mxu0 0.0
        %1209 = vmatpush1.xpose.msra.mxu0 0.0
        %1210 = vmatprep.subr.mxu0 0.0
        %1211 = vmatpush1.xpose.msra.mxu0 0.0
        %1212 = vmatprep.subr.mxu0 0.0
        %1213 = vmatpush1.xpose.msra.mxu0 0.0
        %1214 = vmatprep.subr.mxu0 0.0
        %1215 = vmatpush1.xpose.msra.mxu0 0.0
        %1216 = vmatprep.subr.mxu0 0.0
        %1217 = vmatpush1.xpose.msra.mxu0 0.0
        %1218 = vmatprep.subr.mxu0 0.0
        %1219 = vmatpush1.xpose.msra.mxu0 0.0
        %1220 = vmatprep.subr.mxu0 0.0
        %1221 = vmatpush1.xpose.msra.mxu0 0.0
        %1222 = vmatprep.subr.mxu0 0.0
        %1223 = vmatpush1.xpose.msra.mxu0 0.0
        %1224 = vmatprep.subr.mxu0 0.0
        %1225 = vmatpush1.xpose.msra.mxu0 %v1192
        %1226 = vmatprep.subr.mxu0 0.0
        %1227 = vmatpush2.xpose.msra.mxu0 0.0
        %1228 = vmatprep.subr.mxu0 0.0
        %1229 = vmatpush2.xpose.msra.mxu0 0.0
        %1230 = vmatprep.subr.mxu0 0.0
        %1231 = vmatpush2.xpose.msra.mxu0 0.0
        %1232 = vmatprep.subr.mxu0 0.0
        %1233 = vmatpush2.xpose.msra.mxu0 0.0
        %1234 = vmatprep.subr.mxu0 0.0
        %1235 = vmatpush2.xpose.msra.mxu0 0.0
        %1236 = vmatprep.subr.mxu0 0.0
        %1237 = vmatpush2.xpose.msra.mxu0 0.0
        %1238 = vmatprep.subr.mxu0 0.0
        %1239 = vmatpush2.xpose.msra.mxu0 0.0
        %1240 = vmatprep.subr.mxu0 0.0
        %1241 = vmatpush2.xpose.msra.mxu0 0.0
        %1242 = vmatprep.subr.mxu0 0.0
        %1243 = vmatpush2.xpose.msra.mxu0 0.0
        %1244 = vmatprep.subr.mxu0 0.0
        %1245 = vmatpush2.xpose.msra.mxu0 0.0
        %1246 = vmatprep.subr.mxu0 0.0
        %1247 = vmatpush2.xpose.msra.mxu0 0.0
        %1248 = vmatprep.subr.mxu0 0.0
        %1249 = vmatpush2.xpose.msra.mxu0 0.0
        %1250 = vmatprep.subr.mxu0 0.0
        %1251 = vmatpush2.xpose.msra.mxu0 0.0
        %1252 = vmatprep.subr.mxu0 0.0
        %1253 = vmatpush2.xpose.msra.mxu0 0.0
        %1254 = vmatprep.subr.mxu0 0.0
        %1255 = vmatpush2.xpose.msra.mxu0 0.0
        %1256 = vmatprep.subr.mxu0 0.0
        %1257 = vmatpush2.xpose.msra.mxu0 0.0
        %1258 = vmatprep.mubr.f32.mxu0 0.0
        %1259 = vmatmul.mubr.f32.gmra.mxu0 %v1189
        %v1260 = vpop.f32.mrf.mxu0
        %v1261 = vadd.f32 0.0, %v1260
        %v1262 = vpop.f32.mrf.mxu0
        %1263 = vdwg.mxu0
        %v1265 = vsel %vm1111, %v509, 0
        %v1268 = vsel %vm1111, %v733, 0
        %1270 = vmatprep.subr.mxu0 0.0
        %1271 = vmatpush1.xpose.msra.mxu0 0.0
        %1272 = vmatprep.subr.mxu0 0.0
        %1273 = vmatpush1.xpose.msra.mxu0 0.0
        %1274 = vmatprep.subr.mxu0 0.0
        %1275 = vmatpush1.xpose.msra.mxu0 0.0
        %1276 = vmatprep.subr.mxu0 0.0
        %1277 = vmatpush1.xpose.msra.mxu0 0.0
        %1278 = vmatprep.subr.mxu0 0.0
        %1279 = vmatpush1.xpose.msra.mxu0 0.0
        %1280 = vmatprep.subr.mxu0 0.0
        %1281 = vmatpush1.xpose.msra.mxu0 0.0
        %1282 = vmatprep.subr.mxu0 0.0
        %1283 = vmatpush1.xpose.msra.mxu0 0.0
        %1284 = vmatprep.subr.mxu0 0.0
        %1285 = vmatpush1.xpose.msra.mxu0 0.0
        %1286 = vmatprep.subr.mxu0 0.0
        %1287 = vmatpush1.xpose.msra.mxu0 0.0
        %1288 = vmatprep.subr.mxu0 0.0
        %1289 = vmatpush1.xpose.msra.mxu0 0.0
        %1290 = vmatprep.subr.mxu0 0.0
        %1291 = vmatpush1.xpose.msra.mxu0 0.0
        %1292 = vmatprep.subr.mxu0 0.0
        %1293 = vmatpush1.xpose.msra.mxu0 0.0
        %1294 = vmatprep.subr.mxu0 0.0
        %1295 = vmatpush1.xpose.msra.mxu0 0.0
        %1296 = vmatprep.subr.mxu0 0.0
        %1297 = vmatpush1.xpose.msra.mxu0 0.0
        %1298 = vmatprep.subr.mxu0 0.0
        %1299 = vmatpush1.xpose.msra.mxu0 0.0
        %1300 = vmatprep.subr.mxu0 0.0
        %1301 = vmatpush1.xpose.msra.mxu0 %v1268
        %1302 = vmatprep.subr.mxu0 0.0
        %1303 = vmatpush2.xpose.msra.mxu0 0.0
        %1304 = vmatprep.subr.mxu0 0.0
        %1305 = vmatpush2.xpose.msra.mxu0 0.0
        %1306 = vmatprep.subr.mxu0 0.0
        %1307 = vmatpush2.xpose.msra.mxu0 0.0
        %1308 = vmatprep.subr.mxu0 0.0
        %1309 = vmatpush2.xpose.msra.mxu0 0.0
        %1310 = vmatprep.subr.mxu0 0.0
        %1311 = vmatpush2.xpose.msra.mxu0 0.0
        %1312 = vmatprep.subr.mxu0 0.0
        %1313 = vmatpush2.xpose.msra.mxu0 0.0
        %1314 = vmatprep.subr.mxu0 0.0
        %1315 = vmatpush2.xpose.msra.mxu0 0.0
        %1316 = vmatprep.subr.mxu0 0.0
        %1317 = vmatpush2.xpose.msra.mxu0 0.0
        %1318 = vmatprep.subr.mxu0 0.0
        %1319 = vmatpush2.xpose.msra.mxu0 0.0
        %1320 = vmatprep.subr.mxu0 0.0
        %1321 = vmatpush2.xpose.msra.mxu0 0.0
        %1322 = vmatprep.subr.mxu0 0.0
        %1323 = vmatpush2.xpose.msra.mxu0 0.0
        %1324 = vmatprep.subr.mxu0 0.0
        %1325 = vmatpush2.xpose.msra.mxu0 0.0
        %1326 = vmatprep.subr.mxu0 0.0
        %1327 = vmatpush2.xpose.msra.mxu0 0.0
        %1328 = vmatprep.subr.mxu0 0.0
        %1329 = vmatpush2.xpose.msra.mxu0 0.0
        %1330 = vmatprep.subr.mxu0 0.0
        %1331 = vmatpush2.xpose.msra.mxu0 0.0
        %1332 = vmatprep.subr.mxu0 0.0
        %1333 = vmatpush2.xpose.msra.mxu0 0.0
        %1334 = vmatprep.mubr.f32.mxu0 0.0
        %1335 = vmatmul.mubr.f32.gmra.mxu0 %v1265
        %v1336 = vpop.f32.mrf.mxu0
        %v1337 = vadd.f32 0.0, %v1336
        %v1338 = vpop.f32.mrf.mxu0
        %1339 = vdwg.mxu0
        %v1341 = vsel %vm1111, %v510, 0
        %v1344 = vsel %vm1111, %v808, 0
        %1346 = vmatprep.subr.mxu0 0.0
        %1347 = vmatpush1.xpose.msra.mxu0 0.0
        %1348 = vmatprep.subr.mxu0 0.0
        %1349 = vmatpush1.xpose.msra.mxu0 0.0
        %1350 = vmatprep.subr.mxu0 0.0
        %1351 = vmatpush1.xpose.msra.mxu0 0.0
        %1352 = vmatprep.subr.mxu0 0.0
        %1353 = vmatpush1.xpose.msra.mxu0 0.0
        %1354 = vmatprep.subr.mxu0 0.0
        %1355 = vmatpush1.xpose.msra.mxu0 0.0
        %1356 = vmatprep.subr.mxu0 0.0
        %1357 = vmatpush1.xpose.msra.mxu0 0.0
        %1358 = vmatprep.subr.mxu0 0.0
        %1359 = vmatpush1.xpose.msra.mxu0 0.0
        %1360 = vmatprep.subr.mxu0 0.0
        %1361 = vmatpush1.xpose.msra.mxu0 0.0
        %1362 = vmatprep.subr.mxu0 0.0
        %1363 = vmatpush1.xpose.msra.mxu0 0.0
        %1364 = vmatprep.subr.mxu0 0.0
        %1365 = vmatpush1.xpose.msra.mxu0 0.0
        %1366 = vmatprep.subr.mxu0 0.0
        %1367 = vmatpush1.xpose.msra.mxu0 0.0
        %1368 = vmatprep.subr.mxu0 0.0
        %1369 = vmatpush1.xpose.msra.mxu0 0.0
        %1370 = vmatprep.subr.mxu0 0.0
        %1371 = vmatpush1.xpose.msra.mxu0 0.0
        %1372 = vmatprep.subr.mxu0 0.0
        %1373 = vmatpush1.xpose.msra.mxu0 0.0
        %1374 = vmatprep.subr.mxu0 0.0
        %1375 = vmatpush1.xpose.msra.mxu0 0.0
        %1376 = vmatprep.subr.mxu0 0.0
        %1377 = vmatpush1.xpose.msra.mxu0 %v1344
        %1378 = vmatprep.subr.mxu0 0.0
        %1379 = vmatpush2.xpose.msra.mxu0 0.0
        %1380 = vmatprep.subr.mxu0 0.0
        %1381 = vmatpush2.xpose.msra.mxu0 0.0
        %1382 = vmatprep.subr.mxu0 0.0
        %1383 = vmatpush2.xpose.msra.mxu0 0.0
        %1384 = vmatprep.subr.mxu0 0.0
        %1385 = vmatpush2.xpose.msra.mxu0 0.0
        %1386 = vmatprep.subr.mxu0 0.0
        %1387 = vmatpush2.xpose.msra.mxu0 0.0
        %1388 = vmatprep.subr.mxu0 0.0
        %1389 = vmatpush2.xpose.msra.mxu0 0.0
        %1390 = vmatprep.subr.mxu0 0.0
        %1391 = vmatpush2.xpose.msra.mxu0 0.0
        %1392 = vmatprep.subr.mxu0 0.0
        %1393 = vmatpush2.xpose.msra.mxu0 0.0
        %1394 = vmatprep.subr.mxu0 0.0
        %1395 = vmatpush2.xpose.msra.mxu0 0.0
        %1396 = vmatprep.subr.mxu0 0.0
        %1397 = vmatpush2.xpose.msra.mxu0 0.0
        %1398 = vmatprep.subr.mxu0 0.0
        %1399 = vmatpush2.xpose.msra.mxu0 0.0
        %1400 = vmatprep.subr.mxu0 0.0
        %1401 = vmatpush2.xpose.msra.mxu0 0.0
        %1402 = vmatprep.subr.mxu0 0.0
        %1403 = vmatpush2.xpose.msra.mxu0 0.0
        %1404 = vmatprep.subr.mxu0 0.0
        %1405 = vmatpush2.xpose.msra.mxu0 0.0
        %1406 = vmatprep.subr.mxu0 0.0
        %1407 = vmatpush2.xpose.msra.mxu0 0.0
        %1408 = vmatprep.subr.mxu0 0.0
        %1409 = vmatpush2.xpose.msra.mxu0 0.0
        %1410 = vmatprep.mubr.f32.mxu0 0.0
        %1411 = vmatmul.mubr.f32.gmra.mxu0 %v1341
        %v1412 = vpop.f32.mrf.mxu0
        %v1413 = vadd.f32 0.0, %v1412
        %v1414 = vpop.f32.mrf.mxu0
        %1415 = vdwg.mxu0
        %v1416 = vsel %vm197, 1, 0
        %vm1417 = vcmp.eq.s32.totalorder %v1416, 1
        %v1418 = vsel %vm1417, %v1185, -1e+30
        %v1419 = vsel %vm1417, %v1261, -1e+30
        %v1420 = vsel %vm1417, %v1337, -1e+30
        %v1421 = vsel %vm1417, %v1413, -1e+30
        %v1422 = vsel %vm1111, %v1418, -inf
        %1423 = vmax.xlane.f32.xlu0 %v1422
        %v1424 = vpop.xlane.xlu0 %1423
        %v1425 = vsel %vm1111, %v1419, -inf
        %1426 = vmax.xlane.f32.xlu0 %v1425
        %v1427 = vpop.xlane.xlu0 %1426
        %v1428 = vsel %vm1111, %v1420, -inf
        %1429 = vmax.xlane.f32.xlu0 %v1428
        %v1430 = vpop.xlane.xlu0 %1429
        %v1431 = vsel %vm1111, %v1421, -inf
        %1432 = vmax.xlane.f32.xlu0 %v1431
        %v1433 = vpop.xlane.xlu0 %1432
        %v1434 = vsub.f32 %v1418, %v1424
        %v1435 = vsub.f32 %v1419, %v1427
        %v1436 = vsub.f32 %v1420, %v1430
        %v1437 = vsub.f32 %v1421, %v1433
        %v1438 = vmul.f32 %v1434, 1.442695
        %v1439 = vpow.pop %v1438
        %v1440 = vmul.f32 %v1435, 1.442695
        %v1441 = vpow.pop %v1440
        %v1442 = vmul.f32 %v1436, 1.442695
        %v1443 = vpow.pop %v1442
        %v1444 = vmul.f32 %v1437, 1.442695
        %v1445 = vpow.pop %v1444
        %v1446 = vsel %vm1111, %v1439, 0.0
        %1447 = vadd.xlane.f32.xlu0 %v1446
        %v1448 = vpop.xlane.xlu0 %1447
        %v1449 = vsel %vm1111, %v1441, 0.0
        %1450 = vadd.xlane.f32.xlu0 %v1449
        %v1451 = vpop.xlane.xlu0 %1450
        %v1452 = vsel %vm1111, %v1443, 0.0
        %1453 = vadd.xlane.f32.xlu0 %v1452
        %v1454 = vpop.xlane.xlu0 %1453
        %v1455 = vsel %vm1111, %v1445, 0.0
        %1456 = vadd.xlane.f32.xlu0 %v1455
        %v1457 = vpop.xlane.xlu0 %1456
        %v1458 = vrcp.pop %v1448
        %v1459 = vmul.f32 %v1439, %v1458
        %v1460 = vrcp.pop %v1451
        %v1461 = vmul.f32 %v1441, %v1460
        %v1462 = vrcp.pop %v1454
        %v1463 = vmul.f32 %v1443, %v1462
        %v1464 = vrcp.pop %v1457
        %v1465 = vmul.f32 %v1445, %v1464
        %v1467 = vsel %vm1111, %v1459, 0
        %1469 = vmatprep.subr.mxu0 0.0
        %1470 = vmatpush1.msra.mxu0 0.0
        %1471 = vmatprep.subr.mxu0 0.0
        %1472 = vmatpush1.msra.mxu0 0.0
        %1473 = vmatprep.subr.mxu0 0.0
        %1474 = vmatpush1.msra.mxu0 0.0
        %1475 = vmatprep.subr.mxu0 0.0
        %1476 = vmatpush1.msra.mxu0 0.0
        %1477 = vmatprep.subr.mxu0 0.0
        %1478 = vmatpush1.msra.mxu0 0.0
        %1479 = vmatprep.subr.mxu0 0.0
        %1480 = vmatpush1.msra.mxu0 0.0
        %1481 = vmatprep.subr.mxu0 0.0
        %1482 = vmatpush1.msra.mxu0 0.0
        %1483 = vmatprep.subr.mxu0 0.0
        %1484 = vmatpush1.msra.mxu0 0.0
        %1485 = vmatprep.subr.mxu0 0.0
        %1486 = vmatpush1.msra.mxu0 0.0
        %1487 = vmatprep.subr.mxu0 0.0
        %1488 = vmatpush1.msra.mxu0 0.0
        %1489 = vmatprep.subr.mxu0 0.0
        %1490 = vmatpush1.msra.mxu0 0.0
        %1491 = vmatprep.subr.mxu0 0.0
        %1492 = vmatpush1.msra.mxu0 0.0
        %1493 = vmatprep.subr.mxu0 0.0
        %1494 = vmatpush1.msra.mxu0 0.0
        %1495 = vmatprep.subr.mxu0 0.0
        %1496 = vmatpush1.msra.mxu0 0.0
        %1497 = vmatprep.subr.mxu0 0.0
        %1498 = vmatpush1.msra.mxu0 0.0
        %1499 = vmatprep.subr.mxu0 0.0
        %1500 = vmatpush1.msra.mxu0 %v883
        %1501 = vmatprep.subr.mxu0 0.0
        %1502 = vmatpush2.msra.mxu0 0.0
        %1503 = vmatprep.subr.mxu0 0.0
        %1504 = vmatpush2.msra.mxu0 0.0
        %1505 = vmatprep.subr.mxu0 0.0
        %1506 = vmatpush2.msra.mxu0 0.0
        %1507 = vmatprep.subr.mxu0 0.0
        %1508 = vmatpush2.msra.mxu0 0.0
        %1509 = vmatprep.subr.mxu0 0.0
        %1510 = vmatpush2.msra.mxu0 0.0
        %1511 = vmatprep.subr.mxu0 0.0
        %1512 = vmatpush2.msra.mxu0 0.0
        %1513 = vmatprep.subr.mxu0 0.0
        %1514 = vmatpush2.msra.mxu0 0.0
        %1515 = vmatprep.subr.mxu0 0.0
        %1516 = vmatpush2.msra.mxu0 0.0
        %1517 = vmatprep.subr.mxu0 0.0
        %1518 = vmatpush2.msra.mxu0 0.0
        %1519 = vmatprep.subr.mxu0 0.0
        %1520 = vmatpush2.msra.mxu0 0.0
        %1521 = vmatprep.subr.mxu0 0.0
        %1522 = vmatpush2.msra.mxu0 0.0
        %1523 = vmatprep.subr.mxu0 0.0
        %1524 = vmatpush2.msra.mxu0 0.0
        %1525 = vmatprep.subr.mxu0 0.0
        %1526 = vmatpush2.msra.mxu0 0.0
        %1527 = vmatprep.subr.mxu0 0.0
        %1528 = vmatpush2.msra.mxu0 0.0
        %1529 = vmatprep.subr.mxu0 0.0
        %1530 = vmatpush2.msra.mxu0 0.0
        %1531 = vmatprep.subr.mxu0 0.0
        %1532 = vmatpush2.msra.mxu0 0.0
        %1533 = vmatprep.mubr.f32.mxu0 0.0
        %1534 = vmatmul.mubr.f32.gmra.mxu0 %v1467
        %v1535 = vpop.f32.mrf.mxu0
        %v1536 = vadd.f32 0.0, %v1535
        %v1537 = vpop.f32.mrf.mxu0
        %1538 = vdwg.mxu0
        %v1540 = vsel %vm1111, %v1461, 0
        %1542 = vmatprep.subr.mxu0 0.0
        %1543 = vmatpush1.msra.mxu0 0.0
        %1544 = vmatprep.subr.mxu0 0.0
        %1545 = vmatpush1.msra.mxu0 0.0
        %1546 = vmatprep.subr.mxu0 0.0
        %1547 = vmatpush1.msra.mxu0 0.0
        %1548 = vmatprep.subr.mxu0 0.0
        %1549 = vmatpush1.msra.mxu0 0.0
        %1550 = vmatprep.subr.mxu0 0.0
        %1551 = vmatpush1.msra.mxu0 0.0
        %1552 = vmatprep.subr.mxu0 0.0
        %1553 = vmatpush1.msra.mxu0 0.0
        %1554 = vmatprep.subr.mxu0 0.0
        %1555 = vmatpush1.msra.mxu0 0.0
        %1556 = vmatprep.subr.mxu0 0.0
        %1557 = vmatpush1.msra.mxu0 0.0
        %1558 = vmatprep.subr.mxu0 0.0
        %1559 = vmatpush1.msra.mxu0 0.0
        %1560 = vmatprep.subr.mxu0 0.0
        %1561 = vmatpush1.msra.mxu0 0.0
        %1562 = vmatprep.subr.mxu0 0.0
        %1563 = vmatpush1.msra.mxu0 0.0
        %1564 = vmatprep.subr.mxu0 0.0
        %1565 = vmatpush1.msra.mxu0 0.0
        %1566 = vmatprep.subr.mxu0 0.0
        %1567 = vmatpush1.msra.mxu0 0.0
        %1568 = vmatprep.subr.mxu0 0.0
        %1569 = vmatpush1.msra.mxu0 0.0
        %1570 = vmatprep.subr.mxu0 0.0
        %1571 = vmatpush1.msra.mxu0 0.0
        %1572 = vmatprep.subr.mxu0 0.0
        %1573 = vmatpush1.msra.mxu0 %v958
        %1574 = vmatprep.subr.mxu0 0.0
        %1575 = vmatpush2.msra.mxu0 0.0
        %1576 = vmatprep.subr.mxu0 0.0
        %1577 = vmatpush2.msra.mxu0 0.0
        %1578 = vmatprep.subr.mxu0 0.0
        %1579 = vmatpush2.msra.mxu0 0.0
        %1580 = vmatprep.subr.mxu0 0.0
        %1581 = vmatpush2.msra.mxu0 0.0
        %1582 = vmatprep.subr.mxu0 0.0
        %1583 = vmatpush2.msra.mxu0 0.0
        %1584 = vmatprep.subr.mxu0 0.0
        %1585 = vmatpush2.msra.mxu0 0.0
        %1586 = vmatprep.subr.mxu0 0.0
        %1587 = vmatpush2.msra.mxu0 0.0
        %1588 = vmatprep.subr.mxu0 0.0
        %1589 = vmatpush2.msra.mxu0 0.0
        %1590 = vmatprep.subr.mxu0 0.0
        %1591 = vmatpush2.msra.mxu0 0.0
        %1592 = vmatprep.subr.mxu0 0.0
        %1593 = vmatpush2.msra.mxu0 0.0
        %1594 = vmatprep.subr.mxu0 0.0
        %1595 = vmatpush2.msra.mxu0 0.0
        %1596 = vmatprep.subr.mxu0 0.0
        %1597 = vmatpush2.msra.mxu0 0.0
        %1598 = vmatprep.subr.mxu0 0.0
        %1599 = vmatpush2.msra.mxu0 0.0
        %1600 = vmatprep.subr.mxu0 0.0
        %1601 = vmatpush2.msra.mxu0 0.0
        %1602 = vmatprep.subr.mxu0 0.0
        %1603 = vmatpush2.msra.mxu0 0.0
        %1604 = vmatprep.subr.mxu0 0.0
        %1605 = vmatpush2.msra.mxu0 0.0
        %1606 = vmatprep.mubr.f32.mxu0 0.0
        %1607 = vmatmul.mubr.f32.gmra.mxu0 %v1540
        %v1608 = vpop.f32.mrf.mxu0
        %v1609 = vadd.f32 0.0, %v1608
        %v1610 = vpop.f32.mrf.mxu0
        %1611 = vdwg.mxu0
        %v1613 = vsel %vm1111, %v1463, 0
        %1615 = vmatprep.subr.mxu0 0.0
        %1616 = vmatpush1.msra.mxu0 0.0
        %1617 = vmatprep.subr.mxu0 0.0
        %1618 = vmatpush1.msra.mxu0 0.0
        %1619 = vmatprep.subr.mxu0 0.0
        %1620 = vmatpush1.msra.mxu0 0.0
        %1621 = vmatprep.subr.mxu0 0.0
        %1622 = vmatpush1.msra.mxu0 0.0
        %1623 = vmatprep.subr.mxu0 0.0
        %1624 = vmatpush1.msra.mxu0 0.0
        %1625 = vmatprep.subr.mxu0 0.0
        %1626 = vmatpush1.msra.mxu0 0.0
        %1627 = vmatprep.subr.mxu0 0.0
        %1628 = vmatpush1.msra.mxu0 0.0
        %1629 = vmatprep.subr.mxu0 0.0
        %1630 = vmatpush1.msra.mxu0 0.0
        %1631 = vmatprep.subr.mxu0 0.0
        %1632 = vmatpush1.msra.mxu0 0.0
        %1633 = vmatprep.subr.mxu0 0.0
        %1634 = vmatpush1.msra.mxu0 0.0
        %1635 = vmatprep.subr.mxu0 0.0
        %1636 = vmatpush1.msra.mxu0 0.0
        %1637 = vmatprep.subr.mxu0 0.0
        %1638 = vmatpush1.msra.mxu0 0.0
        %1639 = vmatprep.subr.mxu0 0.0
        %1640 = vmatpush1.msra.mxu0 0.0
        %1641 = vmatprep.subr.mxu0 0.0
        %1642 = vmatpush1.msra.mxu0 0.0
        %1643 = vmatprep.subr.mxu0 0.0
        %1644 = vmatpush1.msra.mxu0 0.0
        %1645 = vmatprep.subr.mxu0 0.0
        %1646 = vmatpush1.msra.mxu0 %v1033
        %1647 = vmatprep.subr.mxu0 0.0
        %1648 = vmatpush2.msra.mxu0 0.0
        %1649 = vmatprep.subr.mxu0 0.0
        %1650 = vmatpush2.msra.mxu0 0.0
        %1651 = vmatprep.subr.mxu0 0.0
        %1652 = vmatpush2.msra.mxu0 0.0
        %1653 = vmatprep.subr.mxu0 0.0
        %1654 = vmatpush2.msra.mxu0 0.0
        %1655 = vmatprep.subr.mxu0 0.0
        %1656 = vmatpush2.msra.mxu0 0.0
        %1657 = vmatprep.subr.mxu0 0.0
        %1658 = vmatpush2.msra.mxu0 0.0
        %1659 = vmatprep.subr.mxu0 0.0
        %1660 = vmatpush2.msra.mxu0 0.0
        %1661 = vmatprep.subr.mxu0 0.0
        %1662 = vmatpush2.msra.mxu0 0.0
        %1663 = vmatprep.subr.mxu0 0.0
        %1664 = vmatpush2.msra.mxu0 0.0
        %1665 = vmatprep.subr.mxu0 0.0
        %1666 = vmatpush2.msra.mxu0 0.0
        %1667 = vmatprep.subr.mxu0 0.0
        %1668 = vmatpush2.msra.mxu0 0.0
        %1669 = vmatprep.subr.mxu0 0.0
        %1670 = vmatpush2.msra.mxu0 0.0
        %1671 = vmatprep.subr.mxu0 0.0
        %1672 = vmatpush2.msra.mxu0 0.0
        %1673 = vmatprep.subr.mxu0 0.0
        %1674 = vmatpush2.msra.mxu0 0.0
        %1675 = vmatprep.subr.mxu0 0.0
        %1676 = vmatpush2.msra.mxu0 0.0
        %1677 = vmatprep.subr.mxu0 0.0
        %1678 = vmatpush2.msra.mxu0 0.0
        %1679 = vmatprep.mubr.f32.mxu0 0.0
        %1680 = vmatmul.mubr.f32.gmra.mxu0 %v1613
        %v1681 = vpop.f32.mrf.mxu0
        %v1682 = vadd.f32 0.0, %v1681
        %v1683 = vpop.f32.mrf.mxu0
        %1684 = vdwg.mxu0
        %v1686 = vsel %vm1111, %v1465, 0
        %1688 = vmatprep.subr.mxu0 0.0
        %1689 = vmatpush1.msra.mxu0 0.0
        %1690 = vmatprep.subr.mxu0 0.0
        %1691 = vmatpush1.msra.mxu0 0.0
        %1692 = vmatprep.subr.mxu0 0.0
        %1693 = vmatpush1.msra.mxu0 0.0
        %1694 = vmatprep.subr.mxu0 0.0
        %1695 = vmatpush1.msra.mxu0 0.0
        %1696 = vmatprep.subr.mxu0 0.0
        %1697 = vmatpush1.msra.mxu0 0.0
        %1698 = vmatprep.subr.mxu0 0.0
        %1699 = vmatpush1.msra.mxu0 0.0
        %1700 = vmatprep.subr.mxu0 0.0
        %1701 = vmatpush1.msra.mxu0 0.0
        %1702 = vmatprep.subr.mxu0 0.0
        %1703 = vmatpush1.msra.mxu0 0.0
        %1704 = vmatprep.subr.mxu0 0.0
        %1705 = vmatpush1.msra.mxu0 0.0
        %1706 = vmatprep.subr.mxu0 0.0
        %1707 = vmatpush1.msra.mxu0 0.0
        %1708 = vmatprep.subr.mxu0 0.0
        %1709 = vmatpush1.msra.mxu0 0.0
        %1710 = vmatprep.subr.mxu0 0.0
        %1711 = vmatpush1.msra.mxu0 0.0
        %1712 = vmatprep.subr.mxu0 0.0
        %1713 = vmatpush1.msra.mxu0 0.0
        %1714 = vmatprep.subr.mxu0 0.0
        %1715 = vmatpush1.msra.mxu0 0.0
        %1716 = vmatprep.subr.mxu0 0.0
        %1717 = vmatpush1.msra.mxu0 0.0
        %1718 = vmatprep.subr.mxu0 0.0
        %1719 = vmatpush1.msra.mxu0 %v1108
        %1720 = vmatprep.subr.mxu0 0.0
        %1721 = vmatpush2.msra.mxu0 0.0
        %1722 = vmatprep.subr.mxu0 0.0
        %1723 = vmatpush2.msra.mxu0 0.0
        %1724 = vmatprep.subr.mxu0 0.0
        %1725 = vmatpush2.msra.mxu0 0.0
        %1726 = vmatprep.subr.mxu0 0.0
        %1727 = vmatpush2.msra.mxu0 0.0
        %1728 = vmatprep.subr.mxu0 0.0
        %1729 = vmatpush2.msra.mxu0 0.0
        %1730 = vmatprep.subr.mxu0 0.0
        %1731 = vmatpush2.msra.mxu0 0.0
        %1732 = vmatprep.subr.mxu0 0.0
        %1733 = vmatpush2.msra.mxu0 0.0
        %1734 = vmatprep.subr.mxu0 0.0
        %1735 = vmatpush2.msra.mxu0 0.0
        %1736 = vmatprep.subr.mxu0 0.0
        %1737 = vmatpush2.msra.mxu0 0.0
        %1738 = vmatprep.subr.mxu0 0.0
        %1739 = vmatpush2.msra.mxu0 0.0
        %1740 = vmatprep.subr.mxu0 0.0
        %1741 = vmatpush2.msra.mxu0 0.0
        %1742 = vmatprep.subr.mxu0 0.0
        %1743 = vmatpush2.msra.mxu0 0.0
        %1744 = vmatprep.subr.mxu0 0.0
        %1745 = vmatpush2.msra.mxu0 0.0
        %1746 = vmatprep.subr.mxu0 0.0
        %1747 = vmatpush2.msra.mxu0 0.0
        %1748 = vmatprep.subr.mxu0 0.0
        %1749 = vmatpush2.msra.mxu0 0.0
        %1750 = vmatprep.subr.mxu0 0.0
        %1751 = vmatpush2.msra.mxu0 0.0
        %1752 = vmatprep.mubr.f32.mxu0 0.0
        %1753 = vmatmul.mubr.f32.gmra.mxu0 %v1686
        %v1754 = vpop.f32.mrf.mxu0
        %v1755 = vadd.f32 0.0, %v1754
        %v1756 = vpop.f32.mrf.mxu0
        %1757 = vdwg.mxu0
        %1758 = vst.msk [vmem:[#allocation2] sm:$0xff] %vm1111, %v1536
        %1760 = vrot.lane.b32.xlu0 %v1609, 8
        %v1761 = vpop.permute.xlu0 %1760
        %vm1763 = vcmask 130112
        %1764 = vst.msk [vmem:[#allocation2] sm:$0xff] %vm1763, %v1761
        %1766 = vrot.lane.b32.xlu0 %v1682, 16
        %v1767 = vpop.permute.xlu0 %1766
        %vm1769 = vcmask 195712
        %1770 = vst.msk [vmem:[#allocation2] sm:$0xff] %vm1769, %v1767
        %1772 = vrot.lane.b32.xlu0 %v1755, 24
        %v1773 = vpop.permute.xlu0 %1772
        %vm1775 = vcmask 261312
        %1776 = vst.msk [vmem:[#allocation2] sm:$0xff] %vm1775, %v1773
        %v1777 = vld [vmem:[#allocation2] sm:$0xff]
        %v1779 = vlaneseq
        %v1780 = vshrl.u32 %v1779, 7
        %v1781 = vsub.s32 0, %v1780
        %v1782 = vrot.slane %v202, %v1781
        %v1785 = vsel %vm208, %v1777, 0
        %1787 = vmatprep.subr.mxu0 0.0
        %1788 = vmatpush1.msra.mxu0 0.0
        %1789 = vmatprep.subr.mxu0 0.0
        %1790 = vmatpush1.msra.mxu0 0.0
        %1791 = vmatprep.subr.mxu0 0.0
        %1792 = vmatpush1.msra.mxu0 0.0
        %1793 = vmatprep.subr.mxu0 0.0
        %1794 = vmatpush1.msra.mxu0 0.0
        %1795 = vmatprep.subr.mxu0 0.0
        %1796 = vmatpush1.msra.mxu0 0.0
        %1797 = vmatprep.subr.mxu0 0.0
        %1798 = vmatpush1.msra.mxu0 0.0
        %1799 = vmatprep.subr.mxu0 0.0
        %1800 = vmatpush1.msra.mxu0 0.0
        %1801 = vmatprep.subr.mxu0 0.0
        %1802 = vmatpush1.msra.mxu0 0.0
        %1803 = vmatprep.subr.mxu0 0.0
        %1804 = vmatpush1.msra.mxu0 0.0
        %1805 = vmatprep.subr.mxu0 0.0
        %1806 = vmatpush1.msra.mxu0 0.0
        %1807 = vmatprep.subr.mxu0 0.0
        %1808 = vmatpush1.msra.mxu0 0.0
        %1809 = vmatprep.subr.mxu0 0.0
        %1810 = vmatpush1.msra.mxu0 0.0
        %1811 = vmatprep.subr.mxu0 0.0
        %1812 = vmatpush1.msra.mxu0 %v201
        %1813 = vmatprep.subr.mxu0 0.0
        %1814 = vmatpush1.msra.mxu0 %v200
        %1815 = vmatprep.subr.mxu0 0.0
        %1816 = vmatpush1.msra.mxu0 %v199
        %1817 = vmatprep.subr.mxu0 0.0
        %1818 = vmatpush1.msra.mxu0 %v198
        %1819 = vmatprep.subr.mxu0 0.0
        %1820 = vmatpush2.msra.mxu0 0.0
        %1821 = vmatprep.subr.mxu0 0.0
        %1822 = vmatpush2.msra.mxu0 0.0
        %1823 = vmatprep.subr.mxu0 0.0
        %1824 = vmatpush2.msra.mxu0 0.0
        %1825 = vmatprep.subr.mxu0 0.0
        %1826 = vmatpush2.msra.mxu0 0.0
        %1827 = vmatprep.subr.mxu0 0.0
        %1828 = vmatpush2.msra.mxu0 0.0
        %1829 = vmatprep.subr.mxu0 0.0
        %1830 = vmatpush2.msra.mxu0 0.0
        %1831 = vmatprep.subr.mxu0 0.0
        %1832 = vmatpush2.msra.mxu0 0.0
        %1833 = vmatprep.subr.mxu0 0.0
        %1834 = vmatpush2.msra.mxu0 0.0
        %1835 = vmatprep.subr.mxu0 0.0
        %1836 = vmatpush2.msra.mxu0 0.0
        %1837 = vmatprep.subr.mxu0 0.0
        %1838 = vmatpush2.msra.mxu0 0.0
        %1839 = vmatprep.subr.mxu0 0.0
        %1840 = vmatpush2.msra.mxu0 0.0
        %1841 = vmatprep.subr.mxu0 0.0
        %1842 = vmatpush2.msra.mxu0 0.0
        %1843 = vmatprep.subr.mxu0 0.0
        %1844 = vmatpush2.msra.mxu0 0.0
        %1845 = vmatprep.subr.mxu0 0.0
        %1846 = vmatpush2.msra.mxu0 0.0
        %1847 = vmatprep.subr.mxu0 0.0
        %1848 = vmatpush2.msra.mxu0 0.0
        %1849 = vmatprep.subr.mxu0 0.0
        %1850 = vmatpush2.msra.mxu0 0.0
        %1851 = vmatprep.mubr.f32.mxu0 0.0
        %1852 = vmatmul.mubr.f32.gmra.mxu0 %v1785
        %v1853 = vpop.f32.mrf.mxu0
        %v1854 = vadd.f32 %v1782, %v1853
        %v1855 = vpop.f32.mrf.mxu0
        %1856 = vdwg.mxu0
        %1857 = vst.msk [vmem:[%s188] sm:$0xff] %vm208, %v1854
        %s1858 = sand.u32 %s115, 1
        %s1859 = scalar_lea.sflag [#allocation4], %s1858
        %s1860 = sand.u32 %s115, 1
        %s1861 = smul.addr %s1860, 8
        %s1862 = scalar_lea.vmem [#allocation3], %s1861
        // Predicated region
        $region37: #{tpu_custom_call.1} parent=35 // pred_check
          %p1863 = pneg %p125
        $region38: #{tpu_custom_call.1} parent=35 // pred_check_branch
          %1865 = sbr.rel (%p1863) target = $region40
        $region39: #{tpu_custom_call.1} parent=35 // pred_region
          %s1867 = ssub.s32 128, 128
          %1868 = vsyncadd %s1859, %s1867
          %s1869 = smul.addr %s18, 128
          %s1870 = scalar_lea.hbm %s4, %s1869
          %s1872 = sshll.u32 %s1862, 4
          %s1873 = int_to_ptr.vmem [resolvable:$true] %s1872
          %1875 = dma.vmem_to_hbm [thread:$0]  %s1873, 128, %s1870, %s1859
        $region40: #{tpu_custom_call.1} parent=35 // pred_fallthru
          _
      $region36: #{tpu_custom_call.1} parent=5 // pred_fallthru
        _
      %p1876 = scmp.le.s32.totalorder 2, %s13
      // Predicated region
      $region41: #{tpu_custom_call.1} parent=5 // pred_check
        %p1877 = pneg %p1876
      $region42: #{tpu_custom_call.1} parent=5 // pred_check_branch
        %1879 = sbr.rel (%p1877) target = $region44
      $region43: #{tpu_custom_call.1} parent=5 // pred_region
        %s1880 = ssub.s32 %s13, 2
        // Predicated region
        $region45: #{tpu_custom_call.1} parent=43 // pred_check
          %p1881 = pneg %p131
        $region46: #{tpu_custom_call.1} parent=43 // pred_check_branch
          %1883 = sbr.rel (%p1881) target = $region48
        $region47: #{tpu_custom_call.1} parent=43 // pred_region
          %s1884 = sand.u32 %s116, 1
          %s1885 = scalar_lea.sflag [#allocation4], %s1884
          %s1886 = sand.u32 %s116, 1
          %s1887 = smul.addr %s1886, 8
          %s1888 = scalar_lea.vmem [#allocation3], %s1887
          %1889 = dma.done %s1885, 128
        $region48: #{tpu_custom_call.1} parent=43 // pred_fallthru
          _
      $region44: #{tpu_custom_call.1} parent=5 // pred_fallthru
        _
    $region6: #{tpu_custom_call.1} parent=1 // loop_footer
      %s17 = sadd.s32 1, %s13
    $region7: #{tpu_custom_call.1} parent=1 // loop_footer_branch
      %12 = sbr.rel target = $region3
    $region8: #{tpu_custom_call.1} parent=1 // loop_exit
      _
    %1890 = vsyncpa [#allocation4], 1
    %s1891 = scalar_lea.sflag [#allocation4], 1
    %1892 = vsyncpa %s1891, 1

</llo_original>
